<compile_context>
chip_gen: v7x
topology: tpu7x:2x2x1
jax: 0.10.0
libtpu: 0.0.40
codegen_flags: <defaults>
</compile_context>

<pallas_src>
import jax
import jax.numpy as jnp
import numpy as np
from jax import lax
from jax.experimental import pallas as pl
from jax.experimental.pallas import tpu as pltpu


# ----------------------------- Pallas kernel --------------------------------
def hgnn_kernel(init_ref, mask_ref, ee_ref, nfc_ref, nattn_ref,
                wt_ref, b_ref, bns_ref, bnb_ref, out_ref):
    """Single invocation: all L layers run inside one kernel body."""
    L = ee_ref.shape[0]
    mask = mask_ref[...]                                   # [N, N]  layer-invariant

    def layer(l, feat):
        # nodes_feat * nodes_fc[0]
        h = feat * nfc_ref[l]                              # [N, H]

        # Independent MXU work issued off the attention critical path:
        # h @ Wt does not depend on `a`, so the matmul overlaps the
        # VPU/XLU work (ft reduce, transpose, leaky_relu, mask).
        hw = jnp.dot(h, wt_ref[l], preferred_element_type=jnp.float32)   # [N, H]

        # per-node attention scalar ft = sum(h * nodes_attn, -1)
        ft = jnp.sum(h * nattn_ref[l], axis=-1, keepdims=True)           # [N, 1]

        # e[v,u] = ft[v] + ft[u] + ee[v,u]  (dst v rows, src u cols)
        s = ft + jnp.transpose(ft) + ee_ref[l]                           # [N, N]

        # leaky_relu(0.02) then mask out non-edges
        a = jnp.where(s >= 0, s, 0.02 * s) * mask                        # [N, N]

        # (a @ h) @ Wt + b  ==  a @ (h @ Wt) + b   (reassociated, same FLOPs)
        lin = jnp.dot(a, hw, preferred_element_type=jnp.float32) + b_ref[l]

        # eval-mode BatchNorm1d folded into scale/shift, then relu
        bn = lin * bns_ref[l] + bnb_ref[l]                 # [N, H]
        act = jnp.maximum(bn, 0.0)

        # residual (+ eval-mode dropout = identity)
        return act + feat

    out_ref[...] = lax.fori_loop(0, L, layer, init_ref[...], unroll=True)


def hgnn_forward(init_feat, mask, ee, nfc, nattn, wt, b, bns, bnb):
    """init_feat: [N,H]; mask: [N,N]; ee: [L,N,N]; nfc/nattn/b/bns/bnb: [L,1,H];
    wt: [L,H,H] (already transposed so the kernel does x @ Wt)."""
    L, N, _ = ee.shape
    H = init_feat.shape[1]

    inputs = (init_feat, mask, ee, nfc, nattn, wt, b, bns, bnb)
    flops = L * (2 * N * N * H + 2 * N * H * H)
    bytes_accessed = sum(int(a.size) * a.dtype.itemsize for a in inputs) + N * H * 4

    vmem = lambda: pl.BlockSpec(memory_space=pltpu.MemorySpace.VMEM)
    return pl.pallas_call(
        hgnn_kernel,
        out_shape=jax.ShapeDtypeStruct((N, H), jnp.float32),
        in_specs=[vmem() for _ in range(len(inputs))],
        out_specs=vmem(),
        cost_estimate=pl.CostEstimate(flops=flops, transcendentals=0,
                                      bytes_accessed=bytes_accessed),
    )(*inputs)


# --------------------------- pure-JAX reference ------------------------------
def hgnn_reference(init_feat, mask, ee, nfc, nattn, wt, b, bns, bnb):
    feat = init_feat
    L = ee.shape[0]
    for l in range(L):
        h = feat * nfc[l, 0]
        ft = jnp.sum(h * nattn[l, 0], axis=-1)
        s = ft[:, None] + ft[None, :] + ee[l]
        a = jnp.where(s >= 0, s, 0.02 * s) * mask
        agg = a @ h
        lin = agg @ wt[l] + b[l, 0]
        bn = lin * bns[l, 0] + bnb[l, 0]
        act = jnp.maximum(bn, 0.0)
        feat = act + feat
    return feat


# -------------------------------- main ---------------------------------------
if __name__ == "__main__":
    key = jax.random.PRNGKey(0)
    N = 64          # number of nodes
    H = 32          # num_hidden
    L = 3           # num_layer
    T = 5           # number of edge types (edges.max() + 1)
    NODE_TYPES = 3  # number of node types (nodes[:, 1].max() + 1)

    keys = jax.random.split(key, 16)

    def xavier(k, shape):
        fan_in, fan_out = shape[-1], shape[-2] if len(shape) > 1 else shape[-1]
        bound = jnp.sqrt(6.0 / (fan_in + fan_out))
        return jax.random.uniform(k, shape, jnp.float32, -bound, bound)

    # --- synthetic graph (at most one edge per (src, dst) pair) --------------
    node_ids = jnp.arange(N, dtype=jnp.int32)                       # nodes[:, 0]
    mask = (jax.random.uniform(keys[0], (N, N)) < 0.25).astype(jnp.float32)
    edge_types = jax.random.randint(keys[1], (N, N), 0, T)          # type of edge src->dst

    # --- parameters (deterministic synthetic init) ---------------------------
    node_emb_table = xavier(keys[2], (N + 1, H))                    # nn.Embedding
    edge_emb = xavier(keys[3], (L, T, H))                           # per-layer edge_embedding.weight
    nodes_fc = xavier(keys[4], (L, NODE_TYPES, H))                  # per-layer nodes_fc
    edges_fc = xavier(keys[5], (L, T, H))                           # per-layer edges_fc
    nodes_attn = xavier(keys[6], (L, 1, H))                         # per-layer nodes_attn
    edges_attn = xavier(keys[7], (L, 1, H))                         # per-layer edges_attn
    lin_w = xavier(keys[8], (L, H, H))                              # Linear weight [out, in]
    lin_b = 0.01 * jax.random.normal(keys[9], (L, 1, H), jnp.float32)

    # BatchNorm1d eval mode with default stats: gamma=1, beta=0, mean=0, var=1
    eps = 1e-5
    bn_scale = jnp.ones((L, 1, H), jnp.float32) / jnp.sqrt(1.0 + eps)
    bn_shift = jnp.zeros((L, 1, H), jnp.float32)

    # --- JAX glue: gathers / reshapes outside the kernel ----------------------
    init_feat = node_emb_table[node_ids]                            # [N, H]
    # per-layer per-edge-type scalar, gathered onto the dense [N,N] structure
    ee_type = jnp.sum(edge_emb * edges_fc * edges_attn, axis=-1)    # [L, T]
    ee = ee_type[:, edge_types] * mask[None, :, :]                  # [L, N, N]
    nfc0 = nodes_fc[:, 0:1, :]                                      # [L, 1, H] (only row 0 used)
    wt = jnp.transpose(lin_w, (0, 2, 1))                            # pre-transpose for x @ W^T

    # --- run ------------------------------------------------------------------
    out = hgnn_forward(init_feat, mask, ee, nfc0, nodes_attn, wt, lin_b,
                       bn_scale, bn_shift)
    out = jax.block_until_ready(out)

    ref = hgnn_reference(init_feat, mask, ee, nfc0, nodes_attn, wt, lin_b,
                         bn_scale, bn_shift)
    np.testing.assert_allclose(np.asarray(out), np.asarray(ref),
                               rtol=1e-4, atol=1e-4)
    print("KERNEL_OK")
</pallas_src>

<mosaic_0001>
module attributes {stable_mosaic.version = 11 : i64} {
  func.func @hgnn_kernel(%arg0: memref<64x32xf32, #tpu.memory_space<vmem>>, %arg1: memref<64x64xf32, #tpu.memory_space<vmem>>, %arg2: memref<3x64x64xf32, #tpu.memory_space<vmem>>, %arg3: memref<3x1x32xf32, #tpu.memory_space<vmem>>, %arg4: memref<3x1x32xf32, #tpu.memory_space<vmem>>, %arg5: memref<3x32x32xf32, #tpu.memory_space<vmem>>, %arg6: memref<3x1x32xf32, #tpu.memory_space<vmem>>, %arg7: memref<3x1x32xf32, #tpu.memory_space<vmem>>, %arg8: memref<3x1x32xf32, #tpu.memory_space<vmem>>, %arg9: memref<64x32xf32, #tpu.memory_space<vmem>>) attributes {dimension_semantics = [], scalar_prefetch = 0 : i64, scratch_operands = 0 : i64, tpu.core_type = #tpu.core_type<tc>} {
    %c0 = arith.constant 0 : index
    %c0_0 = arith.constant 0 : index
    %0 = vector.load %arg1[%c0, %c0_0] : memref<64x64xf32, #tpu.memory_space<vmem>>, vector<64x64xf32>
    %c0_1 = arith.constant 0 : index
    %c0_2 = arith.constant 0 : index
    %1 = vector.load %arg0[%c0_1, %c0_2] : memref<64x32xf32, #tpu.memory_space<vmem>>, vector<64x32xf32>
    %c0_i32 = arith.constant 0 : i32
    %2 = arith.index_cast %c0_i32 : i32 to index
    %c0_3 = arith.constant 0 : index
    %c0_4 = arith.constant 0 : index
    %3 = vector.load %arg3[%2, %c0_3, %c0_4] : memref<3x1x32xf32, #tpu.memory_space<vmem>>, vector<1x1x32xf32>
    %4 = vector.shape_cast %3 : vector<1x1x32xf32> to vector<1x32xf32>
    %5 = vector.broadcast %4 : vector<1x32xf32> to vector<64x32xf32>
    %6 = arith.mulf %1, %5 : vector<64x32xf32>
    %7 = arith.index_cast %c0_i32 : i32 to index
    %c0_5 = arith.constant 0 : index
    %c0_6 = arith.constant 0 : index
    %8 = vector.load %arg5[%7, %c0_5, %c0_6] : memref<3x32x32xf32, #tpu.memory_space<vmem>>, vector<1x32x32xf32>
    %9 = vector.shape_cast %8 : vector<1x32x32xf32> to vector<32x32xf32>
    %cst = arith.constant dense<0.000000e+00> : vector<64x32xf32>
    %10 = tpu.matmul %6, %9, %cst {dimension_numbers = #tpu.dot_dimension_numbers<[1], [0], [0], [1], [0, 0, 1, 1], [], []>} : vector<64x32xf32>, vector<32x32xf32>, vector<64x32xf32> -> vector<64x32xf32>
    %11 = arith.index_cast %c0_i32 : i32 to index
    %c0_7 = arith.constant 0 : index
    %c0_8 = arith.constant 0 : index
    %12 = vector.load %arg4[%11, %c0_7, %c0_8] : memref<3x1x32xf32, #tpu.memory_space<vmem>>, vector<1x1x32xf32>
    %13 = vector.shape_cast %12 : vector<1x1x32xf32> to vector<1x32xf32>
    %14 = vector.broadcast %13 : vector<1x32xf32> to vector<64x32xf32>
    %15 = arith.mulf %6, %14 : vector<64x32xf32>
    %cst_9 = arith.constant dense<0.000000e+00> : vector<64xf32>
    %16 = vector.multi_reduction <add>, %15, %cst_9 [1] : vector<64x32xf32> to vector<64xf32>
    %17 = vector.shape_cast %16 : vector<64xf32> to vector<64x1xf32>
    %18 = tpu.transpose %17, [1, 0] : vector<64x1xf32> -> vector<1x64xf32>
    %19 = vector.broadcast %17 : vector<64x1xf32> to vector<64x64xf32>
    %20 = vector.broadcast %18 : vector<1x64xf32> to vector<64x64xf32>
    %21 = arith.addf %19, %20 : vector<64x64xf32>
    %22 = arith.index_cast %c0_i32 : i32 to index
    %c0_10 = arith.constant 0 : index
    %c0_11 = arith.constant 0 : index
    %23 = vector.load %arg2[%22, %c0_10, %c0_11] : memref<3x64x64xf32, #tpu.memory_space<vmem>>, vector<1x64x64xf32>
    %24 = vector.shape_cast %23 : vector<1x64x64xf32> to vector<64x64xf32>
    %25 = arith.addf %21, %24 : vector<64x64xf32>
    %cst_12 = arith.constant 0.000000e+00 : f32
    %26 = vector.broadcast %cst_12 : f32 to vector<64x64xf32>
    %27 = arith.cmpf oge, %25, %26 : vector<64x64xf32>
    %cst_13 = arith.constant 2.000000e-02 : f32
    %28 = vector.broadcast %cst_13 : f32 to vector<64x64xf32>
    %29 = arith.mulf %28, %25 : vector<64x64xf32>
    %30 = arith.select %27, %25, %29 : vector<64x64xi1>, vector<64x64xf32>
    %31 = arith.mulf %30, %0 : vector<64x64xf32>
    %cst_14 = arith.constant dense<0.000000e+00> : vector<64x32xf32>
    %32 = tpu.matmul %31, %10, %cst_14 {dimension_numbers = #tpu.dot_dimension_numbers<[1], [0], [0], [1], [0, 0, 1, 1], [], []>} : vector<64x64xf32>, vector<64x32xf32>, vector<64x32xf32> -> vector<64x32xf32>
    %33 = arith.index_cast %c0_i32 : i32 to index
    %c0_15 = arith.constant 0 : index
    %c0_16 = arith.constant 0 : index
    %34 = vector.load %arg6[%33, %c0_15, %c0_16] : memref<3x1x32xf32, #tpu.memory_space<vmem>>, vector<1x1x32xf32>
    %35 = vector.shape_cast %34 : vector<1x1x32xf32> to vector<1x32xf32>
    %36 = vector.broadcast %35 : vector<1x32xf32> to vector<64x32xf32>
    %37 = arith.addf %32, %36 : vector<64x32xf32>
    %38 = arith.index_cast %c0_i32 : i32 to index
    %c0_17 = arith.constant 0 : index
    %c0_18 = arith.constant 0 : index
    %39 = vector.load %arg7[%38, %c0_17, %c0_18] : memref<3x1x32xf32, #tpu.memory_space<vmem>>, vector<1x1x32xf32>
    %40 = vector.shape_cast %39 : vector<1x1x32xf32> to vector<1x32xf32>
    %41 = vector.broadcast %40 : vector<1x32xf32> to vector<64x32xf32>
    %42 = arith.mulf %37, %41 : vector<64x32xf32>
    %43 = arith.index_cast %c0_i32 : i32 to index
    %c0_19 = arith.constant 0 : index
    %c0_20 = arith.constant 0 : index
    %44 = vector.load %arg8[%43, %c0_19, %c0_20] : memref<3x1x32xf32, #tpu.memory_space<vmem>>, vector<1x1x32xf32>
    %45 = vector.shape_cast %44 : vector<1x1x32xf32> to vector<1x32xf32>
    %46 = vector.broadcast %45 : vector<1x32xf32> to vector<64x32xf32>
    %47 = arith.addf %42, %46 : vector<64x32xf32>
    %cst_21 = arith.constant 0.000000e+00 : f32
    %48 = vector.broadcast %cst_21 : f32 to vector<64x32xf32>
    %49 = arith.maximumf %47, %48 : vector<64x32xf32>
    %50 = arith.addf %49, %1 : vector<64x32xf32>
    %c1_i32 = arith.constant 1 : i32
    %51 = arith.index_cast %c1_i32 : i32 to index
    %c0_22 = arith.constant 0 : index
    %c0_23 = arith.constant 0 : index
    %52 = vector.load %arg3[%51, %c0_22, %c0_23] : memref<3x1x32xf32, #tpu.memory_space<vmem>>, vector<1x1x32xf32>
    %53 = vector.shape_cast %52 : vector<1x1x32xf32> to vector<1x32xf32>
    %54 = vector.broadcast %53 : vector<1x32xf32> to vector<64x32xf32>
    %55 = arith.mulf %50, %54 : vector<64x32xf32>
    %56 = arith.index_cast %c1_i32 : i32 to index
    %c0_24 = arith.constant 0 : index
    %c0_25 = arith.constant 0 : index
    %57 = vector.load %arg5[%56, %c0_24, %c0_25] : memref<3x32x32xf32, #tpu.memory_space<vmem>>, vector<1x32x32xf32>
    %58 = vector.shape_cast %57 : vector<1x32x32xf32> to vector<32x32xf32>
    %cst_26 = arith.constant dense<0.000000e+00> : vector<64x32xf32>
    %59 = tpu.matmul %55, %58, %cst_26 {dimension_numbers = #tpu.dot_dimension_numbers<[1], [0], [0], [1], [0, 0, 1, 1], [], []>} : vector<64x32xf32>, vector<32x32xf32>, vector<64x32xf32> -> vector<64x32xf32>
    %60 = arith.index_cast %c1_i32 : i32 to index
    %c0_27 = arith.constant 0 : index
    %c0_28 = arith.constant 0 : index
    %61 = vector.load %arg4[%60, %c0_27, %c0_28] : memref<3x1x32xf32, #tpu.memory_space<vmem>>, vector<1x1x32xf32>
    %62 = vector.shape_cast %61 : vector<1x1x32xf32> to vector<1x32xf32>
    %63 = vector.broadcast %62 : vector<1x32xf32> to vector<64x32xf32>
    %64 = arith.mulf %55, %63 : vector<64x32xf32>
    %cst_29 = arith.constant dense<0.000000e+00> : vector<64xf32>
    %65 = vector.multi_reduction <add>, %64, %cst_29 [1] : vector<64x32xf32> to vector<64xf32>
    %66 = vector.shape_cast %65 : vector<64xf32> to vector<64x1xf32>
    %67 = tpu.transpose %66, [1, 0] : vector<64x1xf32> -> vector<1x64xf32>
    %68 = vector.broadcast %66 : vector<64x1xf32> to vector<64x64xf32>
    %69 = vector.broadcast %67 : vector<1x64xf32> to vector<64x64xf32>
    %70 = arith.addf %68, %69 : vector<64x64xf32>
    %71 = arith.index_cast %c1_i32 : i32 to index
    %c0_30 = arith.constant 0 : index
    %c0_31 = arith.constant 0 : index
    %72 = vector.load %arg2[%71, %c0_30, %c0_31] : memref<3x64x64xf32, #tpu.memory_space<vmem>>, vector<1x64x64xf32>
    %73 = vector.shape_cast %72 : vector<1x64x64xf32> to vector<64x64xf32>
    %74 = arith.addf %70, %73 : vector<64x64xf32>
    %cst_32 = arith.constant 0.000000e+00 : f32
    %75 = vector.broadcast %cst_32 : f32 to vector<64x64xf32>
    %76 = arith.cmpf oge, %74, %75 : vector<64x64xf32>
    %cst_33 = arith.constant 2.000000e-02 : f32
    %77 = vector.broadcast %cst_33 : f32 to vector<64x64xf32>
    %78 = arith.mulf %77, %74 : vector<64x64xf32>
    %79 = arith.select %76, %74, %78 : vector<64x64xi1>, vector<64x64xf32>
    %80 = arith.mulf %79, %0 : vector<64x64xf32>
    %cst_34 = arith.constant dense<0.000000e+00> : vector<64x32xf32>
    %81 = tpu.matmul %80, %59, %cst_34 {dimension_numbers = #tpu.dot_dimension_numbers<[1], [0], [0], [1], [0, 0, 1, 1], [], []>} : vector<64x64xf32>, vector<64x32xf32>, vector<64x32xf32> -> vector<64x32xf32>
    %82 = arith.index_cast %c1_i32 : i32 to index
    %c0_35 = arith.constant 0 : index
    %c0_36 = arith.constant 0 : index
    %83 = vector.load %arg6[%82, %c0_35, %c0_36] : memref<3x1x32xf32, #tpu.memory_space<vmem>>, vector<1x1x32xf32>
    %84 = vector.shape_cast %83 : vector<1x1x32xf32> to vector<1x32xf32>
    %85 = vector.broadcast %84 : vector<1x32xf32> to vector<64x32xf32>
    %86 = arith.addf %81, %85 : vector<64x32xf32>
    %87 = arith.index_cast %c1_i32 : i32 to index
    %c0_37 = arith.constant 0 : index
    %c0_38 = arith.constant 0 : index
    %88 = vector.load %arg7[%87, %c0_37, %c0_38] : memref<3x1x32xf32, #tpu.memory_space<vmem>>, vector<1x1x32xf32>
    %89 = vector.shape_cast %88 : vector<1x1x32xf32> to vector<1x32xf32>
    %90 = vector.broadcast %89 : vector<1x32xf32> to vector<64x32xf32>
    %91 = arith.mulf %86, %90 : vector<64x32xf32>
    %92 = arith.index_cast %c1_i32 : i32 to index
    %c0_39 = arith.constant 0 : index
    %c0_40 = arith.constant 0 : index
    %93 = vector.load %arg8[%92, %c0_39, %c0_40] : memref<3x1x32xf32, #tpu.memory_space<vmem>>, vector<1x1x32xf32>
    %94 = vector.shape_cast %93 : vector<1x1x32xf32> to vector<1x32xf32>
    %95 = vector.broadcast %94 : vector<1x32xf32> to vector<64x32xf32>
    %96 = arith.addf %91, %95 : vector<64x32xf32>
    %cst_41 = arith.constant 0.000000e+00 : f32
    %97 = vector.broadcast %cst_41 : f32 to vector<64x32xf32>
    %98 = arith.maximumf %96, %97 : vector<64x32xf32>
    %99 = arith.addf %98, %50 : vector<64x32xf32>
    %c2_i32 = arith.constant 2 : i32
    %100 = arith.index_cast %c2_i32 : i32 to index
    %c0_42 = arith.constant 0 : index
    %c0_43 = arith.constant 0 : index
    %101 = vector.load %arg3[%100, %c0_42, %c0_43] : memref<3x1x32xf32, #tpu.memory_space<vmem>>, vector<1x1x32xf32>
    %102 = vector.shape_cast %101 : vector<1x1x32xf32> to vector<1x32xf32>
    %103 = vector.broadcast %102 : vector<1x32xf32> to vector<64x32xf32>
    %104 = arith.mulf %99, %103 : vector<64x32xf32>
    %105 = arith.index_cast %c2_i32 : i32 to index
    %c0_44 = arith.constant 0 : index
    %c0_45 = arith.constant 0 : index
    %106 = vector.load %arg5[%105, %c0_44, %c0_45] : memref<3x32x32xf32, #tpu.memory_space<vmem>>, vector<1x32x32xf32>
    %107 = vector.shape_cast %106 : vector<1x32x32xf32> to vector<32x32xf32>
    %cst_46 = arith.constant dense<0.000000e+00> : vector<64x32xf32>
    %108 = tpu.matmul %104, %107, %cst_46 {dimension_numbers = #tpu.dot_dimension_numbers<[1], [0], [0], [1], [0, 0, 1, 1], [], []>} : vector<64x32xf32>, vector<32x32xf32>, vector<64x32xf32> -> vector<64x32xf32>
    %109 = arith.index_cast %c2_i32 : i32 to index
    %c0_47 = arith.constant 0 : index
    %c0_48 = arith.constant 0 : index
    %110 = vector.load %arg4[%109, %c0_47, %c0_48] : memref<3x1x32xf32, #tpu.memory_space<vmem>>, vector<1x1x32xf32>
    %111 = vector.shape_cast %110 : vector<1x1x32xf32> to vector<1x32xf32>
    %112 = vector.broadcast %111 : vector<1x32xf32> to vector<64x32xf32>
    %113 = arith.mulf %104, %112 : vector<64x32xf32>
    %cst_49 = arith.constant dense<0.000000e+00> : vector<64xf32>
    %114 = vector.multi_reduction <add>, %113, %cst_49 [1] : vector<64x32xf32> to vector<64xf32>
    %115 = vector.shape_cast %114 : vector<64xf32> to vector<64x1xf32>
    %116 = tpu.transpose %115, [1, 0] : vector<64x1xf32> -> vector<1x64xf32>
    %117 = vector.broadcast %115 : vector<64x1xf32> to vector<64x64xf32>
    %118 = vector.broadcast %116 : vector<1x64xf32> to vector<64x64xf32>
    %119 = arith.addf %117, %118 : vector<64x64xf32>
    %120 = arith.index_cast %c2_i32 : i32 to index
    %c0_50 = arith.constant 0 : index
    %c0_51 = arith.constant 0 : index
    %121 = vector.load %arg2[%120, %c0_50, %c0_51] : memref<3x64x64xf32, #tpu.memory_space<vmem>>, vector<1x64x64xf32>
    %122 = vector.shape_cast %121 : vector<1x64x64xf32> to vector<64x64xf32>
    %123 = arith.addf %119, %122 : vector<64x64xf32>
    %cst_52 = arith.constant 0.000000e+00 : f32
    %124 = vector.broadcast %cst_52 : f32 to vector<64x64xf32>
    %125 = arith.cmpf oge, %123, %124 : vector<64x64xf32>
    %cst_53 = arith.constant 2.000000e-02 : f32
    %126 = vector.broadcast %cst_53 : f32 to vector<64x64xf32>
    %127 = arith.mulf %126, %123 : vector<64x64xf32>
    %128 = arith.select %125, %123, %127 : vector<64x64xi1>, vector<64x64xf32>
    %129 = arith.mulf %128, %0 : vector<64x64xf32>
    %cst_54 = arith.constant dense<0.000000e+00> : vector<64x32xf32>
    %130 = tpu.matmul %129, %108, %cst_54 {dimension_numbers = #tpu.dot_dimension_numbers<[1], [0], [0], [1], [0, 0, 1, 1], [], []>} : vector<64x64xf32>, vector<64x32xf32>, vector<64x32xf32> -> vector<64x32xf32>
    %131 = arith.index_cast %c2_i32 : i32 to index
    %c0_55 = arith.constant 0 : index
    %c0_56 = arith.constant 0 : index
    %132 = vector.load %arg6[%131, %c0_55, %c0_56] : memref<3x1x32xf32, #tpu.memory_space<vmem>>, vector<1x1x32xf32>
    %133 = vector.shape_cast %132 : vector<1x1x32xf32> to vector<1x32xf32>
    %134 = vector.broadcast %133 : vector<1x32xf32> to vector<64x32xf32>
    %135 = arith.addf %130, %134 : vector<64x32xf32>
    %136 = arith.index_cast %c2_i32 : i32 to index
    %c0_57 = arith.constant 0 : index
    %c0_58 = arith.constant 0 : index
    %137 = vector.load %arg7[%136, %c0_57, %c0_58] : memref<3x1x32xf32, #tpu.memory_space<vmem>>, vector<1x1x32xf32>
    %138 = vector.shape_cast %137 : vector<1x1x32xf32> to vector<1x32xf32>
    %139 = vector.broadcast %138 : vector<1x32xf32> to vector<64x32xf32>
    %140 = arith.mulf %135, %139 : vector<64x32xf32>
    %141 = arith.index_cast %c2_i32 : i32 to index
    %c0_59 = arith.constant 0 : index
    %c0_60 = arith.constant 0 : index
    %142 = vector.load %arg8[%141, %c0_59, %c0_60] : memref<3x1x32xf32, #tpu.memory_space<vmem>>, vector<1x1x32xf32>
    %143 = vector.shape_cast %142 : vector<1x1x32xf32> to vector<1x32xf32>
    %144 = vector.broadcast %143 : vector<1x32xf32> to vector<64x32xf32>
    %145 = arith.addf %140, %144 : vector<64x32xf32>
    %cst_61 = arith.constant 0.000000e+00 : f32
    %146 = vector.broadcast %cst_61 : f32 to vector<64x32xf32>
    %147 = arith.maximumf %145, %146 : vector<64x32xf32>
    %148 = arith.addf %147, %99 : vector<64x32xf32>
    %c3_i32 = arith.constant 3 : i32
    %c0_62 = arith.constant 0 : index
    %c0_63 = arith.constant 0 : index
    %149 = vector.load %arg9[%c0_62, %c0_63] : memref<64x32xf32, #tpu.memory_space<vmem>>, vector<64x32xf32>
    tpu.vector_store %arg9[%c0_62, %c0_63], %148 {strides = array<i32>} : memref<64x32xf32, #tpu.memory_space<vmem>>, vector<64x32xf32>,
    return
  }
}

</mosaic_0001>

<llo_original>
// kernel: tpu_custom_call.1
$region0: #{tpu_custom_call.1}
  #allocation0 [shape = 'u32[]', space=smem, size = 0x4, offset = 0x4, fixed_abs, tag = 'smem constant byte address 0x4 - core index']
  #allocation1 [shape = 'u32[144,128]{1,0:T(1,128)}', space=vmem, size = 0x12000, scoped, tag = 'internal scratch']
  %s0 = inlined_call_operand.vmem [shape: f32[64,32], index: 0, kind: input, shape index: {}]
  %s1 = inlined_call_operand.hbm [shape: f32[64,64], index: 1, kind: input, shape index: {}]
  %s2 = inlined_call_operand.hbm [shape: f32[3,64,64], index: 2, kind: input, shape index: {}]
  %s3 = inlined_call_operand.vmem [shape: f32[3,1,32], index: 3, kind: input, shape index: {}]
  %s4 = inlined_call_operand.vmem [shape: f32[3,1,32], index: 4, kind: input, shape index: {}]
  %s5 = inlined_call_operand.vmem [shape: f32[3,32,32], index: 5, kind: input, shape index: {}]
  %s6 = inlined_call_operand.vmem [shape: f32[3,1,32], index: 6, kind: input, shape index: {}]
  %s7 = inlined_call_operand.vmem [shape: f32[3,1,32], index: 7, kind: input, shape index: {}]
  %s8 = inlined_call_operand.vmem [shape: f32[3,1,32], index: 8, kind: input, shape index: {}]
  %s9 = inlined_call_operand.vmem [shape: f32[64,32], index: 9, kind: output, shape index: {}]
  %s10 = sld [smem:[#allocation0]]
  $region54: #{tpu_custom_call.1} parent=0
    _
  %s12 = ssub.s32 1, %s10
  %s13 = scalar_select 0, %s12, %s10
  $region1: #{tpu_custom_call.1} parent=0
    #allocation2 [shape = 'u8[32768]{0}', space=vmem, size = 0x8000, scoped, tag = 'input window, operand 1, single buffered']
    #allocation3 [shape = 's32[1]{0}', space=sflag, size = 0x4, scoped, tag = 'scoped memory for tpu_custom_call.1']
    #allocation4 [shape = 'u8[98304]{0}', space=vmem, size = 0x18000, scoped, tag = 'input window, operand 2, single buffered']
    #allocation5 [shape = 's32[1]{0}', space=sflag, size = 0x4, scoped, tag = 'scoped memory for tpu_custom_call.1']
    %14 = vsyncpa [#allocation3], 0
    %15 = vsyncpa [#allocation5], 0
    // Predicated region
    $region2: #{tpu_custom_call.1} parent=1 // pred_check
      _
    $region3: #{tpu_custom_call.1} parent=1 // pred_check_branch
      %17 = sbr.rel (0) target = $region5
    $region4: #{tpu_custom_call.1} parent=1 // pred_region
      _
    $region5: #{tpu_custom_call.1} parent=1 // pred_fallthru
      _
    // Predicated region
    $region6: #{tpu_custom_call.1} parent=1 // pred_check
      _
    $region7: #{tpu_custom_call.1} parent=1 // pred_check_branch
      %19 = sbr.rel (0) target = $region9
    $region8: #{tpu_custom_call.1} parent=1 // pred_region
      %s21 = ssub.s32 1024, 1024
      %22 = vsyncadd [#allocation3], %s21
      %s23 = sshll.u32 [#allocation2], 4
      %s24 = int_to_ptr.vmem [resolvable:$true] %s23
      %29 = dma.hbm_to_vmem [thread:$0]  %s1, 1024, %s24, [#allocation3], 128, 128, 8
    $region9: #{tpu_custom_call.1} parent=1 // pred_fallthru
      _
    // Predicated region
    $region10: #{tpu_custom_call.1} parent=1 // pred_check
      _
    $region11: #{tpu_custom_call.1} parent=1 // pred_check_branch
      %31 = sbr.rel (0) target = $region13
    $region12: #{tpu_custom_call.1} parent=1 // pred_region
      %s33 = ssub.s32 3072, 3072
      %34 = vsyncadd [#allocation5], %s33
      %s35 = sshll.u32 [#allocation4], 4
      %s36 = int_to_ptr.vmem [resolvable:$true] %s35
      %41 = dma.hbm_to_vmem [thread:$0]  %s2, 3072, %s36, [#allocation5], 128, 128, 8
    $region13: #{tpu_custom_call.1} parent=1 // pred_fallthru
      _
    // Predicated region
    $region14: #{tpu_custom_call.1} parent=1 // pred_check
      _
    $region15: #{tpu_custom_call.1} parent=1 // pred_check_branch
      %43 = sbr.rel (0) target = $region17
    $region16: #{tpu_custom_call.1} parent=1 // pred_region
      _
    $region17: #{tpu_custom_call.1} parent=1 // pred_fallthru
      _
    // Predicated region
    $region18: #{tpu_custom_call.1} parent=1 // pred_check
      _
    $region19: #{tpu_custom_call.1} parent=1 // pred_check_branch
      %45 = sbr.rel (0) target = $region21
    $region20: #{tpu_custom_call.1} parent=1 // pred_region
      _
    $region21: #{tpu_custom_call.1} parent=1 // pred_fallthru
      _
    // Predicated region
    $region22: #{tpu_custom_call.1} parent=1 // pred_check
      _
    $region23: #{tpu_custom_call.1} parent=1 // pred_check_branch
      %47 = sbr.rel (0) target = $region25
    $region24: #{tpu_custom_call.1} parent=1 // pred_region
      _
    $region25: #{tpu_custom_call.1} parent=1 // pred_fallthru
      _
    // Predicated region
    $region26: #{tpu_custom_call.1} parent=1 // pred_check
      _
    $region27: #{tpu_custom_call.1} parent=1 // pred_check_branch
      %49 = sbr.rel (0) target = $region29
    $region28: #{tpu_custom_call.1} parent=1 // pred_region
      _
    $region29: #{tpu_custom_call.1} parent=1 // pred_fallthru
      _
    // Predicated region
    $region30: #{tpu_custom_call.1} parent=1 // pred_check
      _
    $region31: #{tpu_custom_call.1} parent=1 // pred_check_branch
      %51 = sbr.rel (0) target = $region33
    $region32: #{tpu_custom_call.1} parent=1 // pred_region
      _
    $region33: #{tpu_custom_call.1} parent=1 // pred_fallthru
      _
    // Predicated region
    $region34: #{tpu_custom_call.1} parent=1 // pred_check
      _
    $region35: #{tpu_custom_call.1} parent=1 // pred_check_branch
      %53 = sbr.rel (0) target = $region37
    $region36: #{tpu_custom_call.1} parent=1 // pred_region
      _
    $region37: #{tpu_custom_call.1} parent=1 // pred_fallthru
      _
    // Predicated region
    $region38: #{tpu_custom_call.1} parent=1 // pred_check
      _
    $region39: #{tpu_custom_call.1} parent=1 // pred_check_branch
      %55 = sbr.rel (0) target = $region41
    $region40: #{tpu_custom_call.1} parent=1 // pred_region
      %56 = dma.done [#allocation3], 1024
    $region41: #{tpu_custom_call.1} parent=1 // pred_fallthru
      _
    // Predicated region
    $region42: #{tpu_custom_call.1} parent=1 // pred_check
      _
    $region43: #{tpu_custom_call.1} parent=1 // pred_check_branch
      %58 = sbr.rel (0) target = $region45
    $region44: #{tpu_custom_call.1} parent=1 // pred_region
      %59 = dma.done [#allocation5], 3072
    $region45: #{tpu_custom_call.1} parent=1 // pred_fallthru
      _
    %v60 = vld [vmem:[#allocation2] sm:$0xff]
    %v61 = vld [vmem:[#allocation2 + $0x8] sm:$0xff]
    %v62 = vld [vmem:[#allocation2 + $0x10] sm:$0xff]
    %v63 = vld [vmem:[#allocation2 + $0x18] sm:$0xff]
    %v64 = vld [vmem:[#allocation2 + $0x20] sm:$0xff]
    %v65 = vld [vmem:[#allocation2 + $0x28] sm:$0xff]
    %v66 = vld [vmem:[#allocation2 + $0x30] sm:$0xff]
    %v67 = vld [vmem:[#allocation2 + $0x38] sm:$0xff]
    %v68 = vld [vmem:[%s0] sm:$0xff]
    %v69 = vld [vmem:[%s0 + $0x8] sm:$0xff]
    %v70 = vld [vmem:[%s0 + $0x10] sm:$0xff]
    %v71 = vld [vmem:[%s0 + $0x18] sm:$0xff]
    %v72 = vld [vmem:[%s0 + $0x20] sm:$0xff]
    %v73 = vld [vmem:[%s0 + $0x28] sm:$0xff]
    %v74 = vld [vmem:[%s0 + $0x30] sm:$0xff]
    %v75 = vld [vmem:[%s0 + $0x38] sm:$0xff]
    %v76 = vld [vmem:[%s3] sm:$0x1]
    %v78 = vlaneseq
    %v79 = vshrl.u32 %v78, 7
    %v80 = vsub.s32 0, %v79
    %v81 = vrot.slane %v76, %v80
    %v83 = vmul.f32 %v68, %v81
    %v84 = vmul.f32 %v69, %v81
    %v85 = vmul.f32 %v70, %v81
    %v86 = vmul.f32 %v71, %v81
    %v87 = vmul.f32 %v72, %v81
    %v88 = vmul.f32 %v73, %v81
    %v89 = vmul.f32 %v74, %v81
    %v90 = vmul.f32 %v75, %v81
    %v91 = vld [vmem:[%s5] sm:$0xff]
    %v92 = vld [vmem:[%s5 + $0x8] sm:$0xff]
    %v93 = vld [vmem:[%s5 + $0x10] sm:$0xff]
    %v94 = vld [vmem:[%s5 + $0x18] sm:$0xff]
    %vm95 = vcmask 261120
    %v97 = vsel %vm95, %v83, 0
    %v100 = vsel %vm95, %v84, 0
    %v103 = vsel %vm95, %v85, 0
    %v106 = vsel %vm95, %v86, 0
    %v109 = vsel %vm95, %v87, 0
    %v112 = vsel %vm95, %v88, 0
    %v115 = vsel %vm95, %v89, 0
    %v118 = vsel %vm95, %v90, 0
    %120 = vmatprep.subr.mxu0 0.0
    %121 = vmatpush1.msra.mxu0 %v91
    %122 = vmatprep.subr.mxu0 0.0
    %123 = vmatpush1.msra.mxu0 %v92
    %124 = vmatprep.subr.mxu0 0.0
    %125 = vmatpush1.msra.mxu0 %v93
    %126 = vmatprep.subr.mxu0 0.0
    %127 = vmatpush1.msra.mxu0 %v94
    %128 = vmatprep.subr.mxu0 0.0
    %129 = vmatpush1.msra.mxu0 0.0
    %130 = vmatprep.subr.mxu0 0.0
    %131 = vmatpush1.msra.mxu0 0.0
    %132 = vmatprep.subr.mxu0 0.0
    %133 = vmatpush1.msra.mxu0 0.0
    %134 = vmatprep.subr.mxu0 0.0
    %135 = vmatpush1.msra.mxu0 0.0
    %136 = vmatprep.subr.mxu0 0.0
    %137 = vmatpush1.msra.mxu0 0.0
    %138 = vmatprep.subr.mxu0 0.0
    %139 = vmatpush1.msra.mxu0 0.0
    %140 = vmatprep.subr.mxu0 0.0
    %141 = vmatpush1.msra.mxu0 0.0
    %142 = vmatprep.subr.mxu0 0.0
    %143 = vmatpush1.msra.mxu0 0.0
    %144 = vmatprep.subr.mxu0 0.0
    %145 = vmatpush1.msra.mxu0 0.0
    %146 = vmatprep.subr.mxu0 0.0
    %147 = vmatpush1.msra.mxu0 0.0
    %148 = vmatprep.subr.mxu0 0.0
    %149 = vmatpush1.msra.mxu0 0.0
    %150 = vmatprep.subr.mxu0 0.0
    %151 = vmatpush1.msra.mxu0 0.0
    %152 = vmatprep.subr.mxu0 0.0
    %153 = vmatpush1.msra.mxu0 0.0
    %154 = vmatprep.subr.mxu0 0.0
    %155 = vmatpush1.msra.mxu0 0.0
    %156 = vmatprep.subr.mxu0 0.0
    %157 = vmatpush1.msra.mxu0 0.0
    %158 = vmatprep.subr.mxu0 0.0
    %159 = vmatpush1.msra.mxu0 0.0
    %160 = vmatprep.subr.mxu0 0.0
    %161 = vmatpush1.msra.mxu0 0.0
    %162 = vmatprep.subr.mxu0 0.0
    %163 = vmatpush1.msra.mxu0 0.0
    %164 = vmatprep.subr.mxu0 0.0
    %165 = vmatpush1.msra.mxu0 0.0
    %166 = vmatprep.subr.mxu0 0.0
    %167 = vmatpush1.msra.mxu0 0.0
    %168 = vmatprep.subr.mxu0 0.0
    %169 = vmatpush1.msra.mxu0 0.0
    %170 = vmatprep.subr.mxu0 0.0
    %171 = vmatpush1.msra.mxu0 0.0
    %172 = vmatprep.subr.mxu0 0.0
    %173 = vmatpush1.msra.mxu0 0.0
    %174 = vmatprep.subr.mxu0 0.0
    %175 = vmatpush1.msra.mxu0 0.0
    %176 = vmatprep.subr.mxu0 0.0
    %177 = vmatpush1.msra.mxu0 0.0
    %178 = vmatprep.subr.mxu0 0.0
    %179 = vmatpush1.msra.mxu0 0.0
    %180 = vmatprep.subr.mxu0 0.0
    %181 = vmatpush1.msra.mxu0 0.0
    %182 = vmatprep.subr.mxu0 0.0
    %183 = vmatpush1.msra.mxu0 0.0
    %184 = vmatprep.mubr.f32.mxu0 0.0
    %185 = vmatmul.mubr.f32.gmra.mrb[0].mxu0 %v97
    %v186 = vpop.f32.mrb[0].mxu0
    %v187 = vadd.f32 0.0, %v186
    %v188 = vpop.f32.mrb[0].mxu0
    %189 = vmatprep.mubr.f32.mxu0 0.0
    %190 = vmatmul.mubr.f32.gmra.mrb[0].mxu0 %v100
    %v191 = vpop.f32.mrb[0].mxu0
    %v192 = vadd.f32 0.0, %v191
    %v193 = vpop.f32.mrb[0].mxu0
    %194 = vmatprep.mubr.f32.mxu0 0.0
    %195 = vmatmul.mubr.f32.gmra.mrb[0].mxu0 %v103
    %v196 = vpop.f32.mrb[0].mxu0
    %v197 = vadd.f32 0.0, %v196
    %v198 = vpop.f32.mrb[0].mxu0
    %199 = vmatprep.mubr.f32.mxu0 0.0
    %200 = vmatmul.mubr.f32.gmra.mrb[0].mxu0 %v106
    %v201 = vpop.f32.mrb[0].mxu0
    %v202 = vadd.f32 0.0, %v201
    %v203 = vpop.f32.mrb[0].mxu0
    %204 = vmatprep.mubr.f32.mxu0 0.0
    %205 = vmatmul.mubr.f32.gmra.mrb[0].mxu0 %v109
    %v206 = vpop.f32.mrb[0].mxu0
    %v207 = vadd.f32 0.0, %v206
    %v208 = vpop.f32.mrb[0].mxu0
    %209 = vmatprep.mubr.f32.mxu0 0.0
    %210 = vmatmul.mubr.f32.gmra.mrb[0].mxu0 %v112
    %v211 = vpop.f32.mrb[0].mxu0
    %v212 = vadd.f32 0.0, %v211
    %v213 = vpop.f32.mrb[0].mxu0
    %214 = vmatprep.mubr.f32.mxu0 0.0
    %215 = vmatmul.mubr.f32.gmra.mrb[0].mxu0 %v115
    %v216 = vpop.f32.mrb[0].mxu0
    %v217 = vadd.f32 0.0, %v216
    %v218 = vpop.f32.mrb[0].mxu0
    %219 = vmatprep.mubr.f32.mxu0 0.0
    %220 = vmatmul.mubr.f32.gmra.mrb[0].mxu0 %v118
    %v221 = vpop.f32.mrb[0].mxu0
    %v222 = vadd.f32 0.0, %v221
    %v223 = vpop.f32.mrb[0].mxu0
    %224 = vdwg.mxu0
    %v225 = vld [vmem:[%s4] sm:$0x1]
    %v227 = vlaneseq
    %v228 = vshrl.u32 %v227, 7
    %v229 = vsub.s32 0, %v228
    %v230 = vrot.slane %v225, %v229
    %v232 = vmul.f32 %v83, %v230
    %v233 = vmul.f32 %v84, %v230
    %v234 = vmul.f32 %v85, %v230
    %v235 = vmul.f32 %v86, %v230
    %v236 = vmul.f32 %v87, %v230
    %v237 = vmul.f32 %v88, %v230
    %v238 = vmul.f32 %v89, %v230
    %v239 = vmul.f32 %v90, %v230
    %v240 = vsel %vm95, %v232, 0.0
    %241 = vadd.xlane.f32.xlu0 %v240
    %v242 = vpop.xlane.xlu0 %241
    %v243 = vsel %vm95, %v233, 0.0
    %244 = vadd.xlane.f32.xlu0 %v243
    %v245 = vpop.xlane.xlu0 %244
    %v246 = vsel %vm95, %v234, 0.0
    %247 = vadd.xlane.f32.xlu0 %v246
    %v248 = vpop.xlane.xlu0 %247
    %v249 = vsel %vm95, %v235, 0.0
    %250 = vadd.xlane.f32.xlu0 %v249
    %v251 = vpop.xlane.xlu0 %250
    %v252 = vsel %vm95, %v236, 0.0
    %253 = vadd.xlane.f32.xlu0 %v252
    %v254 = vpop.xlane.xlu0 %253
    %v255 = vsel %vm95, %v237, 0.0
    %256 = vadd.xlane.f32.xlu0 %v255
    %v257 = vpop.xlane.xlu0 %256
    %v258 = vsel %vm95, %v238, 0.0
    %259 = vadd.xlane.f32.xlu0 %v258
    %v260 = vpop.xlane.xlu0 %259
    %v261 = vsel %vm95, %v239, 0.0
    %262 = vadd.xlane.f32.xlu0 %v261
    %v263 = vpop.xlane.xlu0 %262
    %264 = vxpose.xlu0.b32.start [1/16] %v242, 128
    %265 = vxpose.xlu0.b32.cont [2/16] %v245, 128
    %266 = vxpose.xlu0.b32.cont [3/16] %v248, 128
    %267 = vxpose.xlu0.b32.cont [4/16] %v251, 128
    %268 = vxpose.xlu0.b32.cont [5/16] %v254, 128
    %269 = vxpose.xlu0.b32.cont [6/16] %v257, 128
    %270 = vxpose.xlu0.b32.cont [7/16] %v260, 128
    %271 = vxpose.xlu0.b32.cont [8/16] %v263, 128
    %272 = vxpose.xlu0.b32.cont [9/16] 0.0, 128
    %273 = vxpose.xlu0.b32.cont [10/16] 0.0, 128
    %274 = vxpose.xlu0.b32.cont [11/16] 0.0, 128
    %275 = vxpose.xlu0.b32.cont [12/16] 0.0, 128
    %276 = vxpose.xlu0.b32.cont [13/16] 0.0, 128
    %277 = vxpose.xlu0.b32.cont [14/16] 0.0, 128
    %278 = vxpose.xlu0.b32.cont [15/16] 0.0, 128
    %279 = vxpose.xlu0.b32.end [16/16] 0.0, 128
    %v280 = vpop.trf.xlu0
    %v281 = vpop.trf.xlu0
    %v282 = vpop.trf.xlu0
    %v283 = vpop.trf.xlu0
    %v284 = vpop.trf.xlu0
    %v285 = vpop.trf.xlu0
    %v286 = vpop.trf.xlu0
    %v287 = vpop.trf.xlu0
    %v288 = vpop.trf.xlu0
    %v289 = vpop.trf.xlu0
    %v290 = vpop.trf.xlu0
    %v291 = vpop.trf.xlu0
    %v292 = vpop.trf.xlu0
    %v293 = vpop.trf.xlu0
    %v294 = vpop.trf.xlu0
    %v295 = vpop.trf.xlu0
    %v296 = vlaneseq
    %v297 = vshrl.u32 %v296, 7
    %v298 = vsub.s32 0, %v297
    %v299 = vrot.slane %v280, %v298
    %v300 = vadd.f32 %v242, %v299
    %v301 = vadd.f32 %v245, %v299
    %v302 = vadd.f32 %v248, %v299
    %v303 = vadd.f32 %v251, %v299
    %v304 = vadd.f32 %v254, %v299
    %v305 = vadd.f32 %v257, %v299
    %v306 = vadd.f32 %v260, %v299
    %v307 = vadd.f32 %v263, %v299
    %v308 = vld [vmem:[#allocation4] sm:$0xff]
    %v309 = vld [vmem:[#allocation4 + $0x8] sm:$0xff]
    %v310 = vld [vmem:[#allocation4 + $0x10] sm:$0xff]
    %v311 = vld [vmem:[#allocation4 + $0x18] sm:$0xff]
    %v312 = vld [vmem:[#allocation4 + $0x20] sm:$0xff]
    %v313 = vld [vmem:[#allocation4 + $0x28] sm:$0xff]
    %v314 = vld [vmem:[#allocation4 + $0x30] sm:$0xff]
    %v315 = vld [vmem:[#allocation4 + $0x38] sm:$0xff]
    %v316 = vadd.f32 %v300, %v308
    %v317 = vadd.f32 %v301, %v309
    %v318 = vadd.f32 %v302, %v310
    %v319 = vadd.f32 %v303, %v311
    %v320 = vadd.f32 %v304, %v312
    %v321 = vadd.f32 %v305, %v313
    %v322 = vadd.f32 %v306, %v314
    %v323 = vadd.f32 %v307, %v315
    %vm324 = vcmp.ge.f32.partialorder %v316, 0.0
    %vm325 = vcmp.ge.f32.partialorder %v317, 0.0
    %vm326 = vcmp.ge.f32.partialorder %v318, 0.0
    %vm327 = vcmp.ge.f32.partialorder %v319, 0.0
    %vm328 = vcmp.ge.f32.partialorder %v320, 0.0
    %vm329 = vcmp.ge.f32.partialorder %v321, 0.0
    %vm330 = vcmp.ge.f32.partialorder %v322, 0.0
    %vm331 = vcmp.ge.f32.partialorder %v323, 0.0
    %v332 = vmul.f32 %v316, 0.02
    %v333 = vmul.f32 %v317, 0.02
    %v334 = vmul.f32 %v318, 0.02
    %v335 = vmul.f32 %v319, 0.02
    %v336 = vmul.f32 %v320, 0.02
    %v337 = vmul.f32 %v321, 0.02
    %v338 = vmul.f32 %v322, 0.02
    %v339 = vmul.f32 %v323, 0.02
    %v340 = vsel %vm324, %v316, %v332
    %v341 = vsel %vm325, %v317, %v333
    %v342 = vsel %vm326, %v318, %v334
    %v343 = vsel %vm327, %v319, %v335
    %v344 = vsel %vm328, %v320, %v336
    %v345 = vsel %vm329, %v321, %v337
    %v346 = vsel %vm330, %v322, %v338
    %v347 = vsel %vm331, %v323, %v339
    %v348 = vmul.f32 %v340, %v60
    %v349 = vmul.f32 %v341, %v61
    %v350 = vmul.f32 %v342, %v62
    %v351 = vmul.f32 %v343, %v63
    %v352 = vmul.f32 %v344, %v64
    %v353 = vmul.f32 %v345, %v65
    %v354 = vmul.f32 %v346, %v66
    %v355 = vmul.f32 %v347, %v67
    %v356 = vld [vmem:[%s6] sm:$0x1]
    %v358 = vlaneseq
    %v359 = vshrl.u32 %v358, 7
    %v360 = vsub.s32 0, %v359
    %v361 = vrot.slane %v356, %v360
    %vm363 = vcmask 523264
    %v365 = vsel %vm363, %v348, 0
    %v368 = vsel %vm363, %v349, 0
    %v371 = vsel %vm363, %v350, 0
    %v374 = vsel %vm363, %v351, 0
    %v377 = vsel %vm363, %v352, 0
    %v380 = vsel %vm363, %v353, 0
    %v383 = vsel %vm363, %v354, 0
    %v386 = vsel %vm363, %v355, 0
    %388 = vmatprep.subr.mxu0 0.0
    %389 = vmatpush1.msra.mxu0 %v187
    %390 = vmatprep.subr.mxu0 0.0
    %391 = vmatpush1.msra.mxu0 %v192
    %392 = vmatprep.subr.mxu0 0.0
    %393 = vmatpush1.msra.mxu0 %v197
    %394 = vmatprep.subr.mxu0 0.0
    %395 = vmatpush1.msra.mxu0 %v202
    %396 = vmatprep.subr.mxu0 0.0
    %397 = vmatpush1.msra.mxu0 %v207
    %398 = vmatprep.subr.mxu0 0.0
    %399 = vmatpush1.msra.mxu0 %v212
    %400 = vmatprep.subr.mxu0 0.0
    %401 = vmatpush1.msra.mxu0 %v217
    %402 = vmatprep.subr.mxu0 0.0
    %403 = vmatpush1.msra.mxu0 %v222
    %404 = vmatprep.subr.mxu0 0.0
    %405 = vmatpush1.msra.mxu0 0.0
    %406 = vmatprep.subr.mxu0 0.0
    %407 = vmatpush1.msra.mxu0 0.0
    %408 = vmatprep.subr.mxu0 0.0
    %409 = vmatpush1.msra.mxu0 0.0
    %410 = vmatprep.subr.mxu0 0.0
    %411 = vmatpush1.msra.mxu0 0.0
    %412 = vmatprep.subr.mxu0 0.0
    %413 = vmatpush1.msra.mxu0 0.0
    %414 = vmatprep.subr.mxu0 0.0
    %415 = vmatpush1.msra.mxu0 0.0
    %416 = vmatprep.subr.mxu0 0.0
    %417 = vmatpush1.msra.mxu0 0.0
    %418 = vmatprep.subr.mxu0 0.0
    %419 = vmatpush1.msra.mxu0 0.0
    %420 = vmatprep.subr.mxu0 0.0
    %421 = vmatpush1.msra.mxu0 0.0
    %422 = vmatprep.subr.mxu0 0.0
    %423 = vmatpush1.msra.mxu0 0.0
    %424 = vmatprep.subr.mxu0 0.0
    %425 = vmatpush1.msra.mxu0 0.0
    %426 = vmatprep.subr.mxu0 0.0
    %427 = vmatpush1.msra.mxu0 0.0
    %428 = vmatprep.subr.mxu0 0.0
    %429 = vmatpush1.msra.mxu0 0.0
    %430 = vmatprep.subr.mxu0 0.0
    %431 = vmatpush1.msra.mxu0 0.0
    %432 = vmatprep.subr.mxu0 0.0
    %433 = vmatpush1.msra.mxu0 0.0
    %434 = vmatprep.subr.mxu0 0.0
    %435 = vmatpush1.msra.mxu0 0.0
    %436 = vmatprep.subr.mxu0 0.0
    %437 = vmatpush1.msra.mxu0 0.0
    %438 = vmatprep.subr.mxu0 0.0
    %439 = vmatpush1.msra.mxu0 0.0
    %440 = vmatprep.subr.mxu0 0.0
    %441 = vmatpush1.msra.mxu0 0.0
    %442 = vmatprep.subr.mxu0 0.0
    %443 = vmatpush1.msra.mxu0 0.0
    %444 = vmatprep.subr.mxu0 0.0
    %445 = vmatpush1.msra.mxu0 0.0
    %446 = vmatprep.subr.mxu0 0.0
    %447 = vmatpush1.msra.mxu0 0.0
    %448 = vmatprep.subr.mxu0 0.0
    %449 = vmatpush1.msra.mxu0 0.0
    %450 = vmatprep.subr.mxu0 0.0
    %451 = vmatpush1.msra.mxu0 0.0
    %452 = vmatprep.mubr.f32.mxu0 0.0
    %453 = vmatmul.mubr.f32.gmra.mrb[0].mxu0 %v365
    %v454 = vpop.f32.mrb[0].mxu0
    %v455 = vadd.f32 %v361, %v454
    %v456 = vpop.f32.mrb[0].mxu0
    %457 = vmatprep.mubr.f32.mxu0 0.0
    %458 = vmatmul.mubr.f32.gmra.mrb[0].mxu0 %v368
    %v459 = vpop.f32.mrb[0].mxu0
    %v460 = vadd.f32 %v361, %v459
    %v461 = vpop.f32.mrb[0].mxu0
    %462 = vmatprep.mubr.f32.mxu0 0.0
    %463 = vmatmul.mubr.f32.gmra.mrb[0].mxu0 %v371
    %v464 = vpop.f32.mrb[0].mxu0
    %v465 = vadd.f32 %v361, %v464
    %v466 = vpop.f32.mrb[0].mxu0
    %467 = vmatprep.mubr.f32.mxu0 0.0
    %468 = vmatmul.mubr.f32.gmra.mrb[0].mxu0 %v374
    %v469 = vpop.f32.mrb[0].mxu0
    %v470 = vadd.f32 %v361, %v469
    %v471 = vpop.f32.mrb[0].mxu0
    %472 = vmatprep.mubr.f32.mxu0 0.0
    %473 = vmatmul.mubr.f32.gmra.mrb[0].mxu0 %v377
    %v474 = vpop.f32.mrb[0].mxu0
    %v475 = vadd.f32 %v361, %v474
    %v476 = vpop.f32.mrb[0].mxu0
    %477 = vmatprep.mubr.f32.mxu0 0.0
    %478 = vmatmul.mubr.f32.gmra.mrb[0].mxu0 %v380
    %v479 = vpop.f32.mrb[0].mxu0
    %v480 = vadd.f32 %v361, %v479
    %v481 = vpop.f32.mrb[0].mxu0
    %482 = vmatprep.mubr.f32.mxu0 0.0
    %483 = vmatmul.mubr.f32.gmra.mrb[0].mxu0 %v383
    %v484 = vpop.f32.mrb[0].mxu0
    %v485 = vadd.f32 %v361, %v484
    %v486 = vpop.f32.mrb[0].mxu0
    %487 = vmatprep.mubr.f32.mxu0 0.0
    %488 = vmatmul.mubr.f32.gmra.mrb[0].mxu0 %v386
    %v489 = vpop.f32.mrb[0].mxu0
    %v490 = vadd.f32 %v361, %v489
    %v491 = vpop.f32.mrb[0].mxu0
    %492 = vdwg.mxu0
    %v493 = vld [vmem:[%s7] sm:$0x1]
    %v495 = vlaneseq
    %v496 = vshrl.u32 %v495, 7
    %v497 = vsub.s32 0, %v496
    %v498 = vrot.slane %v493, %v497
    %v500 = vmul.f32 %v455, %v498
    %v501 = vmul.f32 %v460, %v498
    %v502 = vmul.f32 %v465, %v498
    %v503 = vmul.f32 %v470, %v498
    %v504 = vmul.f32 %v475, %v498
    %v505 = vmul.f32 %v480, %v498
    %v506 = vmul.f32 %v485, %v498
    %v507 = vmul.f32 %v490, %v498
    %v508 = vld [vmem:[%s8] sm:$0x1]
    %v510 = vlaneseq
    %v511 = vshrl.u32 %v510, 7
    %v512 = vsub.s32 0, %v511
    %v513 = vrot.slane %v508, %v512
    %v515 = vadd.f32 %v500, %v513
    %v516 = vadd.f32 %v501, %v513
    %v517 = vadd.f32 %v502, %v513
    %v518 = vadd.f32 %v503, %v513
    %v519 = vadd.f32 %v504, %v513
    %v520 = vadd.f32 %v505, %v513
    %v521 = vadd.f32 %v506, %v513
    %v522 = vadd.f32 %v507, %v513
    %v523 = vmax.f32 %v515, 0.0
    %v524 = vmax.f32 %v516, 0.0
    %v525 = vmax.f32 %v517, 0.0
    %v526 = vmax.f32 %v518, 0.0
    %v527 = vmax.f32 %v519, 0.0
    %v528 = vmax.f32 %v520, 0.0
    %v529 = vmax.f32 %v521, 0.0
    %v530 = vmax.f32 %v522, 0.0
    %v531 = vadd.f32 %v523, %v68
    %v532 = vadd.f32 %v524, %v69
    %v533 = vadd.f32 %v525, %v70
    %v534 = vadd.f32 %v526, %v71
    %v535 = vadd.f32 %v527, %v72
    %v536 = vadd.f32 %v528, %v73
    %v537 = vadd.f32 %v529, %v74
    %v538 = vadd.f32 %v530, %v75
    %s539 = scalar_lea.vmem %s3, 1
    %v540 = vld [vmem:[%s539] sm:$0x1]
    %v542 = vlaneseq
    %v543 = vshrl.u32 %v542, 7
    %v544 = vsub.s32 0, %v543
    %v545 = vrot.slane %v540, %v544
    %v547 = vmul.f32 %v531, %v545
    %v548 = vmul.f32 %v532, %v545
    %v549 = vmul.f32 %v533, %v545
    %v550 = vmul.f32 %v534, %v545
    %v551 = vmul.f32 %v535, %v545
    %v552 = vmul.f32 %v536, %v545
    %v553 = vmul.f32 %v537, %v545
    %v554 = vmul.f32 %v538, %v545
    %s555 = scalar_lea.vmem %s5, 32
    %v556 = vld [vmem:[%s555] sm:$0xff]
    %v557 = vld [vmem:[%s555 + $0x8] sm:$0xff]
    %v558 = vld [vmem:[%s555 + $0x10] sm:$0xff]
    %v559 = vld [vmem:[%s555 + $0x18] sm:$0xff]
    %v561 = vsel %vm95, %v547, 0
    %v564 = vsel %vm95, %v548, 0
    %v567 = vsel %vm95, %v549, 0
    %v570 = vsel %vm95, %v550, 0
    %v573 = vsel %vm95, %v551, 0
    %v576 = vsel %vm95, %v552, 0
    %v579 = vsel %vm95, %v553, 0
    %v582 = vsel %vm95, %v554, 0
    %584 = vmatprep.subr.mxu0 0.0
    %585 = vmatpush1.msra.mxu0 %v556
    %586 = vmatprep.subr.mxu0 0.0
    %587 = vmatpush1.msra.mxu0 %v557
    %588 = vmatprep.subr.mxu0 0.0
    %589 = vmatpush1.msra.mxu0 %v558
    %590 = vmatprep.subr.mxu0 0.0
    %591 = vmatpush1.msra.mxu0 %v559
    %592 = vmatprep.subr.mxu0 0.0
    %593 = vmatpush1.msra.mxu0 0.0
    %594 = vmatprep.subr.mxu0 0.0
    %595 = vmatpush1.msra.mxu0 0.0
    %596 = vmatprep.subr.mxu0 0.0
    %597 = vmatpush1.msra.mxu0 0.0
    %598 = vmatprep.subr.mxu0 0.0
    %599 = vmatpush1.msra.mxu0 0.0
    %600 = vmatprep.subr.mxu0 0.0
    %601 = vmatpush1.msra.mxu0 0.0
    %602 = vmatprep.subr.mxu0 0.0
    %603 = vmatpush1.msra.mxu0 0.0
    %604 = vmatprep.subr.mxu0 0.0
    %605 = vmatpush1.msra.mxu0 0.0
    %606 = vmatprep.subr.mxu0 0.0
    %607 = vmatpush1.msra.mxu0 0.0
    %608 = vmatprep.subr.mxu0 0.0
    %609 = vmatpush1.msra.mxu0 0.0
    %610 = vmatprep.subr.mxu0 0.0
    %611 = vmatpush1.msra.mxu0 0.0
    %612 = vmatprep.subr.mxu0 0.0
    %613 = vmatpush1.msra.mxu0 0.0
    %614 = vmatprep.subr.mxu0 0.0
    %615 = vmatpush1.msra.mxu0 0.0
    %616 = vmatprep.subr.mxu0 0.0
    %617 = vmatpush1.msra.mxu0 0.0
    %618 = vmatprep.subr.mxu0 0.0
    %619 = vmatpush1.msra.mxu0 0.0
    %620 = vmatprep.subr.mxu0 0.0
    %621 = vmatpush1.msra.mxu0 0.0
    %622 = vmatprep.subr.mxu0 0.0
    %623 = vmatpush1.msra.mxu0 0.0
    %624 = vmatprep.subr.mxu0 0.0
    %625 = vmatpush1.msra.mxu0 0.0
    %626 = vmatprep.subr.mxu0 0.0
    %627 = vmatpush1.msra.mxu0 0.0
    %628 = vmatprep.subr.mxu0 0.0
    %629 = vmatpush1.msra.mxu0 0.0
    %630 = vmatprep.subr.mxu0 0.0
    %631 = vmatpush1.msra.mxu0 0.0
    %632 = vmatprep.subr.mxu0 0.0
    %633 = vmatpush1.msra.mxu0 0.0
    %634 = vmatprep.subr.mxu0 0.0
    %635 = vmatpush1.msra.mxu0 0.0
    %636 = vmatprep.subr.mxu0 0.0
    %637 = vmatpush1.msra.mxu0 0.0
    %638 = vmatprep.subr.mxu0 0.0
    %639 = vmatpush1.msra.mxu0 0.0
    %640 = vmatprep.subr.mxu0 0.0
    %641 = vmatpush1.msra.mxu0 0.0
    %642 = vmatprep.subr.mxu0 0.0
    %643 = vmatpush1.msra.mxu0 0.0
    %644 = vmatprep.subr.mxu0 0.0
    %645 = vmatpush1.msra.mxu0 0.0
    %646 = vmatprep.subr.mxu0 0.0
    %647 = vmatpush1.msra.mxu0 0.0
    %648 = vmatprep.mubr.f32.mxu0 0.0
    %649 = vmatmul.mubr.f32.gmra.mrb[0].mxu0 %v561
    %v650 = vpop.f32.mrb[0].mxu0
    %v651 = vadd.f32 0.0, %v650
    %v652 = vpop.f32.mrb[0].mxu0
    %653 = vmatprep.mubr.f32.mxu0 0.0
    %654 = vmatmul.mubr.f32.gmra.mrb[0].mxu0 %v564
    %v655 = vpop.f32.mrb[0].mxu0
    %v656 = vadd.f32 0.0, %v655
    %v657 = vpop.f32.mrb[0].mxu0
    %658 = vmatprep.mubr.f32.mxu0 0.0
    %659 = vmatmul.mubr.f32.gmra.mrb[0].mxu0 %v567
    %v660 = vpop.f32.mrb[0].mxu0
    %v661 = vadd.f32 0.0, %v660
    %v662 = vpop.f32.mrb[0].mxu0
    %663 = vmatprep.mubr.f32.mxu0 0.0
    %664 = vmatmul.mubr.f32.gmra.mrb[0].mxu0 %v570
    %v665 = vpop.f32.mrb[0].mxu0
    %v666 = vadd.f32 0.0, %v665
    %v667 = vpop.f32.mrb[0].mxu0
    %668 = vmatprep.mubr.f32.mxu0 0.0
    %669 = vmatmul.mubr.f32.gmra.mrb[0].mxu0 %v573
    %v670 = vpop.f32.mrb[0].mxu0
    %v671 = vadd.f32 0.0, %v670
    %v672 = vpop.f32.mrb[0].mxu0
    %673 = vmatprep.mubr.f32.mxu0 0.0
    %674 = vmatmul.mubr.f32.gmra.mrb[0].mxu0 %v576
    %v675 = vpop.f32.mrb[0].mxu0
    %v676 = vadd.f32 0.0, %v675
    %v677 = vpop.f32.mrb[0].mxu0
    %678 = vmatprep.mubr.f32.mxu0 0.0
    %679 = vmatmul.mubr.f32.gmra.mrb[0].mxu0 %v579
    %v680 = vpop.f32.mrb[0].mxu0
    %v681 = vadd.f32 0.0, %v680
    %v682 = vpop.f32.mrb[0].mxu0
    %683 = vmatprep.mubr.f32.mxu0 0.0
    %684 = vmatmul.mubr.f32.gmra.mrb[0].mxu0 %v582
    %v685 = vpop.f32.mrb[0].mxu0
    %v686 = vadd.f32 0.0, %v685
    %v687 = vpop.f32.mrb[0].mxu0
    %688 = vdwg.mxu0
    %s689 = scalar_lea.vmem %s4, 1
    %v690 = vld [vmem:[%s689] sm:$0x1]
    %v692 = vlaneseq
    %v693 = vshrl.u32 %v692, 7
    %v694 = vsub.s32 0, %v693
    %v695 = vrot.slane %v690, %v694
    %v697 = vmul.f32 %v547, %v695
    %v698 = vmul.f32 %v548, %v695
    %v699 = vmul.f32 %v549, %v695
    %v700 = vmul.f32 %v550, %v695
    %v701 = vmul.f32 %v551, %v695
    %v702 = vmul.f32 %v552, %v695
    %v703 = vmul.f32 %v553, %v695
    %v704 = vmul.f32 %v554, %v695
    %v705 = vsel %vm95, %v697, 0.0
    %706 = vadd.xlane.f32.xlu0 %v705
    %v707 = vpop.xlane.xlu0 %706
    %v708 = vsel %vm95, %v698, 0.0
    %709 = vadd.xlane.f32.xlu0 %v708
    %v710 = vpop.xlane.xlu0 %709
    %v711 = vsel %vm95, %v699, 0.0
    %712 = vadd.xlane.f32.xlu0 %v711
    %v713 = vpop.xlane.xlu0 %712
    %v714 = vsel %vm95, %v700, 0.0
    %715 = vadd.xlane.f32.xlu0 %v714
    %v716 = vpop.xlane.xlu0 %715
    %v717 = vsel %vm95, %v701, 0.0
    %718 = vadd.xlane.f32.xlu0 %v717
    %v719 = vpop.xlane.xlu0 %718
    %v720 = vsel %vm95, %v702, 0.0
    %721 = vadd.xlane.f32.xlu0 %v720
    %v722 = vpop.xlane.xlu0 %721
    %v723 = vsel %vm95, %v703, 0.0
    %724 = vadd.xlane.f32.xlu0 %v723
    %v725 = vpop.xlane.xlu0 %724
    %v726 = vsel %vm95, %v704, 0.0
    %727 = vadd.xlane.f32.xlu0 %v726
    %v728 = vpop.xlane.xlu0 %727
    %729 = vxpose.xlu0.b32.start [1/16] %v707, 128
    %730 = vxpose.xlu0.b32.cont [2/16] %v710, 128
    %731 = vxpose.xlu0.b32.cont [3/16] %v713, 128
    %732 = vxpose.xlu0.b32.cont [4/16] %v716, 128
    %733 = vxpose.xlu0.b32.cont [5/16] %v719, 128
    %734 = vxpose.xlu0.b32.cont [6/16] %v722, 128
    %735 = vxpose.xlu0.b32.cont [7/16] %v725, 128
    %736 = vxpose.xlu0.b32.cont [8/16] %v728, 128
    %737 = vxpose.xlu0.b32.cont [9/16] 0.0, 128
    %738 = vxpose.xlu0.b32.cont [10/16] 0.0, 128
    %739 = vxpose.xlu0.b32.cont [11/16] 0.0, 128
    %740 = vxpose.xlu0.b32.cont [12/16] 0.0, 128
    %741 = vxpose.xlu0.b32.cont [13/16] 0.0, 128
    %742 = vxpose.xlu0.b32.cont [14/16] 0.0, 128
    %743 = vxpose.xlu0.b32.cont [15/16] 0.0, 128
    %744 = vxpose.xlu0.b32.end [16/16] 0.0, 128
    %v745 = vpop.trf.xlu0
    %v746 = vpop.trf.xlu0
    %v747 = vpop.trf.xlu0
    %v748 = vpop.trf.xlu0
    %v749 = vpop.trf.xlu0
    %v750 = vpop.trf.xlu0
    %v751 = vpop.trf.xlu0
    %v752 = vpop.trf.xlu0
    %v753 = vpop.trf.xlu0
    %v754 = vpop.trf.xlu0
    %v755 = vpop.trf.xlu0
    %v756 = vpop.trf.xlu0
    %v757 = vpop.trf.xlu0
    %v758 = vpop.trf.xlu0
    %v759 = vpop.trf.xlu0
    %v760 = vpop.trf.xlu0
    %v761 = vlaneseq
    %v762 = vshrl.u32 %v761, 7
    %v763 = vsub.s32 0, %v762
    %v764 = vrot.slane %v745, %v763
    %v765 = vadd.f32 %v707, %v764
    %v766 = vadd.f32 %v710, %v764
    %v767 = vadd.f32 %v713, %v764
    %v768 = vadd.f32 %v716, %v764
    %v769 = vadd.f32 %v719, %v764
    %v770 = vadd.f32 %v722, %v764
    %v771 = vadd.f32 %v725, %v764
    %v772 = vadd.f32 %v728, %v764
    %s773 = scalar_lea.vmem [#allocation4], 64
    %v774 = vld [vmem:[%s773] sm:$0xff]
    %v775 = vld [vmem:[%s773 + $0x8] sm:$0xff]
    %v776 = vld [vmem:[%s773 + $0x10] sm:$0xff]
    %v777 = vld [vmem:[%s773 + $0x18] sm:$0xff]
    %v778 = vld [vmem:[%s773 + $0x20] sm:$0xff]
    %v779 = vld [vmem:[%s773 + $0x28] sm:$0xff]
    %v780 = vld [vmem:[%s773 + $0x30] sm:$0xff]
    %v781 = vld [vmem:[%s773 + $0x38] sm:$0xff]
    %v782 = vadd.f32 %v765, %v774
    %v783 = vadd.f32 %v766, %v775
    %v784 = vadd.f32 %v767, %v776
    %v785 = vadd.f32 %v768, %v777
    %v786 = vadd.f32 %v769, %v778
    %v787 = vadd.f32 %v770, %v779
    %v788 = vadd.f32 %v771, %v780
    %v789 = vadd.f32 %v772, %v781
    %vm790 = vcmp.ge.f32.partialorder %v782, 0.0
    %vm791 = vcmp.ge.f32.partialorder %v783, 0.0
    %vm792 = vcmp.ge.f32.partialorder %v784, 0.0
    %vm793 = vcmp.ge.f32.partialorder %v785, 0.0
    %vm794 = vcmp.ge.f32.partialorder %v786, 0.0
    %vm795 = vcmp.ge.f32.partialorder %v787, 0.0
    %vm796 = vcmp.ge.f32.partialorder %v788, 0.0
    %vm797 = vcmp.ge.f32.partialorder %v789, 0.0
    %v798 = vmul.f32 %v782, 0.02
    %v799 = vmul.f32 %v783, 0.02
    %v800 = vmul.f32 %v784, 0.02
    %v801 = vmul.f32 %v785, 0.02
    %v802 = vmul.f32 %v786, 0.02
    %v803 = vmul.f32 %v787, 0.02
    %v804 = vmul.f32 %v788, 0.02
    %v805 = vmul.f32 %v789, 0.02
    %v806 = vsel %vm790, %v782, %v798
    %v807 = vsel %vm791, %v783, %v799
    %v808 = vsel %vm792, %v784, %v800
    %v809 = vsel %vm793, %v785, %v801
    %v810 = vsel %vm794, %v786, %v802
    %v811 = vsel %vm795, %v787, %v803
    %v812 = vsel %vm796, %v788, %v804
    %v813 = vsel %vm797, %v789, %v805
    %v814 = vmul.f32 %v806, %v60
    %v815 = vmul.f32 %v807, %v61
    %v816 = vmul.f32 %v808, %v62
    %v817 = vmul.f32 %v809, %v63
    %v818 = vmul.f32 %v810, %v64
    %v819 = vmul.f32 %v811, %v65
    %v820 = vmul.f32 %v812, %v66
    %v821 = vmul.f32 %v813, %v67
    %s822 = scalar_lea.vmem %s6, 1
    %v823 = vld [vmem:[%s822] sm:$0x1]
    %v825 = vlaneseq
    %v826 = vshrl.u32 %v825, 7
    %v827 = vsub.s32 0, %v826
    %v828 = vrot.slane %v823, %v827
    %v831 = vsel %vm363, %v814, 0
    %v834 = vsel %vm363, %v815, 0
    %v837 = vsel %vm363, %v816, 0
    %v840 = vsel %vm363, %v817, 0
    %v843 = vsel %vm363, %v818, 0
    %v846 = vsel %vm363, %v819, 0
    %v849 = vsel %vm363, %v820, 0
    %v852 = vsel %vm363, %v821, 0
    %854 = vmatprep.subr.mxu0 0.0
    %855 = vmatpush1.msra.mxu0 %v651
    %856 = vmatprep.subr.mxu0 0.0
    %857 = vmatpush1.msra.mxu0 %v656
    %858 = vmatprep.subr.mxu0 0.0
    %859 = vmatpush1.msra.mxu0 %v661
    %860 = vmatprep.subr.mxu0 0.0
    %861 = vmatpush1.msra.mxu0 %v666
    %862 = vmatprep.subr.mxu0 0.0
    %863 = vmatpush1.msra.mxu0 %v671
    %864 = vmatprep.subr.mxu0 0.0
    %865 = vmatpush1.msra.mxu0 %v676
    %866 = vmatprep.subr.mxu0 0.0
    %867 = vmatpush1.msra.mxu0 %v681
    %868 = vmatprep.subr.mxu0 0.0
    %869 = vmatpush1.msra.mxu0 %v686
    %870 = vmatprep.subr.mxu0 0.0
    %871 = vmatpush1.msra.mxu0 0.0
    %872 = vmatprep.subr.mxu0 0.0
    %873 = vmatpush1.msra.mxu0 0.0
    %874 = vmatprep.subr.mxu0 0.0
    %875 = vmatpush1.msra.mxu0 0.0
    %876 = vmatprep.subr.mxu0 0.0
    %877 = vmatpush1.msra.mxu0 0.0
    %878 = vmatprep.subr.mxu0 0.0
    %879 = vmatpush1.msra.mxu0 0.0
    %880 = vmatprep.subr.mxu0 0.0
    %881 = vmatpush1.msra.mxu0 0.0
    %882 = vmatprep.subr.mxu0 0.0
    %883 = vmatpush1.msra.mxu0 0.0
    %884 = vmatprep.subr.mxu0 0.0
    %885 = vmatpush1.msra.mxu0 0.0
    %886 = vmatprep.subr.mxu0 0.0
    %887 = vmatpush1.msra.mxu0 0.0
    %888 = vmatprep.subr.mxu0 0.0
    %889 = vmatpush1.msra.mxu0 0.0
    %890 = vmatprep.subr.mxu0 0.0
    %891 = vmatpush1.msra.mxu0 0.0
    %892 = vmatprep.subr.mxu0 0.0
    %893 = vmatpush1.msra.mxu0 0.0
    %894 = vmatprep.subr.mxu0 0.0
    %895 = vmatpush1.msra.mxu0 0.0
    %896 = vmatprep.subr.mxu0 0.0
    %897 = vmatpush1.msra.mxu0 0.0
    %898 = vmatprep.subr.mxu0 0.0
    %899 = vmatpush1.msra.mxu0 0.0
    %900 = vmatprep.subr.mxu0 0.0
    %901 = vmatpush1.msra.mxu0 0.0
    %902 = vmatprep.subr.mxu0 0.0
    %903 = vmatpush1.msra.mxu0 0.0
    %904 = vmatprep.subr.mxu0 0.0
    %905 = vmatpush1.msra.mxu0 0.0
    %906 = vmatprep.subr.mxu0 0.0
    %907 = vmatpush1.msra.mxu0 0.0
    %908 = vmatprep.subr.mxu0 0.0
    %909 = vmatpush1.msra.mxu0 0.0
    %910 = vmatprep.subr.mxu0 0.0
    %911 = vmatpush1.msra.mxu0 0.0
    %912 = vmatprep.subr.mxu0 0.0
    %913 = vmatpush1.msra.mxu0 0.0
    %914 = vmatprep.subr.mxu0 0.0
    %915 = vmatpush1.msra.mxu0 0.0
    %916 = vmatprep.subr.mxu0 0.0
    %917 = vmatpush1.msra.mxu0 0.0
    %918 = vmatprep.mubr.f32.mxu0 0.0
    %919 = vmatmul.mubr.f32.gmra.mrb[0].mxu0 %v831
    %v920 = vpop.f32.mrb[0].mxu0
    %v921 = vadd.f32 %v828, %v920
    %v922 = vpop.f32.mrb[0].mxu0
    %923 = vmatprep.mubr.f32.mxu0 0.0
    %924 = vmatmul.mubr.f32.gmra.mrb[0].mxu0 %v834
    %v925 = vpop.f32.mrb[0].mxu0
    %v926 = vadd.f32 %v828, %v925
    %v927 = vpop.f32.mrb[0].mxu0
    %928 = vmatprep.mubr.f32.mxu0 0.0
    %929 = vmatmul.mubr.f32.gmra.mrb[0].mxu0 %v837
    %v930 = vpop.f32.mrb[0].mxu0
    %v931 = vadd.f32 %v828, %v930
    %v932 = vpop.f32.mrb[0].mxu0
    %933 = vmatprep.mubr.f32.mxu0 0.0
    %934 = vmatmul.mubr.f32.gmra.mrb[0].mxu0 %v840
    %v935 = vpop.f32.mrb[0].mxu0
    %v936 = vadd.f32 %v828, %v935
    %v937 = vpop.f32.mrb[0].mxu0
    %938 = vmatprep.mubr.f32.mxu0 0.0
    %939 = vmatmul.mubr.f32.gmra.mrb[0].mxu0 %v843
    %v940 = vpop.f32.mrb[0].mxu0
    %v941 = vadd.f32 %v828, %v940
    %v942 = vpop.f32.mrb[0].mxu0
    %943 = vmatprep.mubr.f32.mxu0 0.0
    %944 = vmatmul.mubr.f32.gmra.mrb[0].mxu0 %v846
    %v945 = vpop.f32.mrb[0].mxu0
    %v946 = vadd.f32 %v828, %v945
    %v947 = vpop.f32.mrb[0].mxu0
    %948 = vmatprep.mubr.f32.mxu0 0.0
    %949 = vmatmul.mubr.f32.gmra.mrb[0].mxu0 %v849
    %v950 = vpop.f32.mrb[0].mxu0
    %v951 = vadd.f32 %v828, %v950
    %v952 = vpop.f32.mrb[0].mxu0
    %953 = vmatprep.mubr.f32.mxu0 0.0
    %954 = vmatmul.mubr.f32.gmra.mrb[0].mxu0 %v852
    %v955 = vpop.f32.mrb[0].mxu0
    %v956 = vadd.f32 %v828, %v955
    %v957 = vpop.f32.mrb[0].mxu0
    %958 = vdwg.mxu0
    %s959 = scalar_lea.vmem %s7, 1
    %v960 = vld [vmem:[%s959] sm:$0x1]
    %v962 = vlaneseq
    %v963 = vshrl.u32 %v962, 7
    %v964 = vsub.s32 0, %v963
    %v965 = vrot.slane %v960, %v964
    %v967 = vmul.f32 %v921, %v965
    %v968 = vmul.f32 %v926, %v965
    %v969 = vmul.f32 %v931, %v965
    %v970 = vmul.f32 %v936, %v965
    %v971 = vmul.f32 %v941, %v965
    %v972 = vmul.f32 %v946, %v965
    %v973 = vmul.f32 %v951, %v965
    %v974 = vmul.f32 %v956, %v965
    %s975 = scalar_lea.vmem %s8, 1
    %v976 = vld [vmem:[%s975] sm:$0x1]
    %v978 = vlaneseq
    %v979 = vshrl.u32 %v978, 7
    %v980 = vsub.s32 0, %v979
    %v981 = vrot.slane %v976, %v980
    %v983 = vadd.f32 %v967, %v981
    %v984 = vadd.f32 %v968, %v981
    %v985 = vadd.f32 %v969, %v981
    %v986 = vadd.f32 %v970, %v981
    %v987 = vadd.f32 %v971, %v981
    %v988 = vadd.f32 %v972, %v981
    %v989 = vadd.f32 %v973, %v981
    %v990 = vadd.f32 %v974, %v981
    %v991 = vmax.f32 %v983, 0.0
    %v992 = vmax.f32 %v984, 0.0
    %v993 = vmax.f32 %v985, 0.0
    %v994 = vmax.f32 %v986, 0.0
    %v995 = vmax.f32 %v987, 0.0
    %v996 = vmax.f32 %v988, 0.0
    %v997 = vmax.f32 %v989, 0.0
    %v998 = vmax.f32 %v990, 0.0
    %v999 = vadd.f32 %v991, %v531
    %v1000 = vadd.f32 %v992, %v532
    %v1001 = vadd.f32 %v993, %v533
    %v1002 = vadd.f32 %v994, %v534
    %v1003 = vadd.f32 %v995, %v535
    %v1004 = vadd.f32 %v996, %v536
    %v1005 = vadd.f32 %v997, %v537
    %v1006 = vadd.f32 %v998, %v538
    %s1007 = scalar_lea.vmem %s3, 2
    %v1008 = vld [vmem:[%s1007] sm:$0x1]
    %v1010 = vlaneseq
    %v1011 = vshrl.u32 %v1010, 7
    %v1012 = vsub.s32 0, %v1011
    %v1013 = vrot.slane %v1008, %v1012
    %v1015 = vmul.f32 %v999, %v1013
    %v1016 = vmul.f32 %v1000, %v1013
    %v1017 = vmul.f32 %v1001, %v1013
    %v1018 = vmul.f32 %v1002, %v1013
    %v1019 = vmul.f32 %v1003, %v1013
    %v1020 = vmul.f32 %v1004, %v1013
    %v1021 = vmul.f32 %v1005, %v1013
    %v1022 = vmul.f32 %v1006, %v1013
    %s1023 = scalar_lea.vmem %s5, 64
    %v1024 = vld [vmem:[%s1023] sm:$0xff]
    %v1025 = vld [vmem:[%s1023 + $0x8] sm:$0xff]
    %v1026 = vld [vmem:[%s1023 + $0x10] sm:$0xff]
    %v1027 = vld [vmem:[%s1023 + $0x18] sm:$0xff]
    %v1029 = vsel %vm95, %v1015, 0
    %v1032 = vsel %vm95, %v1016, 0
    %v1035 = vsel %vm95, %v1017, 0
    %v1038 = vsel %vm95, %v1018, 0
    %v1041 = vsel %vm95, %v1019, 0
    %v1044 = vsel %vm95, %v1020, 0
    %v1047 = vsel %vm95, %v1021, 0
    %v1050 = vsel %vm95, %v1022, 0
    %1052 = vmatprep.subr.mxu0 0.0
    %1053 = vmatpush1.msra.mxu0 %v1024
    %1054 = vmatprep.subr.mxu0 0.0
    %1055 = vmatpush1.msra.mxu0 %v1025
    %1056 = vmatprep.subr.mxu0 0.0
    %1057 = vmatpush1.msra.mxu0 %v1026
    %1058 = vmatprep.subr.mxu0 0.0
    %1059 = vmatpush1.msra.mxu0 %v1027
    %1060 = vmatprep.subr.mxu0 0.0
    %1061 = vmatpush1.msra.mxu0 0.0
    %1062 = vmatprep.subr.mxu0 0.0
    %1063 = vmatpush1.msra.mxu0 0.0
    %1064 = vmatprep.subr.mxu0 0.0
    %1065 = vmatpush1.msra.mxu0 0.0
    %1066 = vmatprep.subr.mxu0 0.0
    %1067 = vmatpush1.msra.mxu0 0.0
    %1068 = vmatprep.subr.mxu0 0.0
    %1069 = vmatpush1.msra.mxu0 0.0
    %1070 = vmatprep.subr.mxu0 0.0
    %1071 = vmatpush1.msra.mxu0 0.0
    %1072 = vmatprep.subr.mxu0 0.0
    %1073 = vmatpush1.msra.mxu0 0.0
    %1074 = vmatprep.subr.mxu0 0.0
    %1075 = vmatpush1.msra.mxu0 0.0
    %1076 = vmatprep.subr.mxu0 0.0
    %1077 = vmatpush1.msra.mxu0 0.0
    %1078 = vmatprep.subr.mxu0 0.0
    %1079 = vmatpush1.msra.mxu0 0.0
    %1080 = vmatprep.subr.mxu0 0.0
    %1081 = vmatpush1.msra.mxu0 0.0
    %1082 = vmatprep.subr.mxu0 0.0
    %1083 = vmatpush1.msra.mxu0 0.0
    %1084 = vmatprep.subr.mxu0 0.0
    %1085 = vmatpush1.msra.mxu0 0.0
    %1086 = vmatprep.subr.mxu0 0.0
    %1087 = vmatpush1.msra.mxu0 0.0
    %1088 = vmatprep.subr.mxu0 0.0
    %1089 = vmatpush1.msra.mxu0 0.0
    %1090 = vmatprep.subr.mxu0 0.0
    %1091 = vmatpush1.msra.mxu0 0.0
    %1092 = vmatprep.subr.mxu0 0.0
    %1093 = vmatpush1.msra.mxu0 0.0
    %1094 = vmatprep.subr.mxu0 0.0
    %1095 = vmatpush1.msra.mxu0 0.0
    %1096 = vmatprep.subr.mxu0 0.0
    %1097 = vmatpush1.msra.mxu0 0.0
    %1098 = vmatprep.subr.mxu0 0.0
    %1099 = vmatpush1.msra.mxu0 0.0
    %1100 = vmatprep.subr.mxu0 0.0
    %1101 = vmatpush1.msra.mxu0 0.0
    %1102 = vmatprep.subr.mxu0 0.0
    %1103 = vmatpush1.msra.mxu0 0.0
    %1104 = vmatprep.subr.mxu0 0.0
    %1105 = vmatpush1.msra.mxu0 0.0
    %1106 = vmatprep.subr.mxu0 0.0
    %1107 = vmatpush1.msra.mxu0 0.0
    %1108 = vmatprep.subr.mxu0 0.0
    %1109 = vmatpush1.msra.mxu0 0.0
    %1110 = vmatprep.subr.mxu0 0.0
    %1111 = vmatpush1.msra.mxu0 0.0
    %1112 = vmatprep.subr.mxu0 0.0
    %1113 = vmatpush1.msra.mxu0 0.0
    %1114 = vmatprep.subr.mxu0 0.0
    %1115 = vmatpush1.msra.mxu0 0.0
    %1116 = vmatprep.mubr.f32.mxu0 0.0
    %1117 = vmatmul.mubr.f32.gmra.mrb[0].mxu0 %v1029
    %v1118 = vpop.f32.mrb[0].mxu0
    %v1119 = vadd.f32 0.0, %v1118
    %v1120 = vpop.f32.mrb[0].mxu0
    %1121 = vmatprep.mubr.f32.mxu0 0.0
    %1122 = vmatmul.mubr.f32.gmra.mrb[0].mxu0 %v1032
    %v1123 = vpop.f32.mrb[0].mxu0
    %v1124 = vadd.f32 0.0, %v1123
    %v1125 = vpop.f32.mrb[0].mxu0
    %1126 = vmatprep.mubr.f32.mxu0 0.0
    %1127 = vmatmul.mubr.f32.gmra.mrb[0].mxu0 %v1035
    %v1128 = vpop.f32.mrb[0].mxu0
    %v1129 = vadd.f32 0.0, %v1128
    %v1130 = vpop.f32.mrb[0].mxu0
    %1131 = vmatprep.mubr.f32.mxu0 0.0
    %1132 = vmatmul.mubr.f32.gmra.mrb[0].mxu0 %v1038
    %v1133 = vpop.f32.mrb[0].mxu0
    %v1134 = vadd.f32 0.0, %v1133
    %v1135 = vpop.f32.mrb[0].mxu0
    %1136 = vmatprep.mubr.f32.mxu0 0.0
    %1137 = vmatmul.mubr.f32.gmra.mrb[0].mxu0 %v1041
    %v1138 = vpop.f32.mrb[0].mxu0
    %v1139 = vadd.f32 0.0, %v1138
    %v1140 = vpop.f32.mrb[0].mxu0
    %1141 = vmatprep.mubr.f32.mxu0 0.0
    %1142 = vmatmul.mubr.f32.gmra.mrb[0].mxu0 %v1044
    %v1143 = vpop.f32.mrb[0].mxu0
    %v1144 = vadd.f32 0.0, %v1143
    %v1145 = vpop.f32.mrb[0].mxu0
    %1146 = vmatprep.mubr.f32.mxu0 0.0
    %1147 = vmatmul.mubr.f32.gmra.mrb[0].mxu0 %v1047
    %v1148 = vpop.f32.mrb[0].mxu0
    %v1149 = vadd.f32 0.0, %v1148
    %v1150 = vpop.f32.mrb[0].mxu0
    %1151 = vmatprep.mubr.f32.mxu0 0.0
    %1152 = vmatmul.mubr.f32.gmra.mrb[0].mxu0 %v1050
    %v1153 = vpop.f32.mrb[0].mxu0
    %v1154 = vadd.f32 0.0, %v1153
    %v1155 = vpop.f32.mrb[0].mxu0
    %1156 = vdwg.mxu0
    %s1157 = scalar_lea.vmem %s4, 2
    %v1158 = vld [vmem:[%s1157] sm:$0x1]
    %v1160 = vlaneseq
    %v1161 = vshrl.u32 %v1160, 7
    %v1162 = vsub.s32 0, %v1161
    %v1163 = vrot.slane %v1158, %v1162
    %v1165 = vmul.f32 %v1015, %v1163
    %v1166 = vmul.f32 %v1016, %v1163
    %v1167 = vmul.f32 %v1017, %v1163
    %v1168 = vmul.f32 %v1018, %v1163
    %v1169 = vmul.f32 %v1019, %v1163
    %v1170 = vmul.f32 %v1020, %v1163
    %v1171 = vmul.f32 %v1021, %v1163
    %v1172 = vmul.f32 %v1022, %v1163
    %v1173 = vsel %vm95, %v1165, 0.0
    %1174 = vadd.xlane.f32.xlu0 %v1173
    %v1175 = vpop.xlane.xlu0 %1174
    %v1176 = vsel %vm95, %v1166, 0.0
    %1177 = vadd.xlane.f32.xlu0 %v1176
    %v1178 = vpop.xlane.xlu0 %1177
    %v1179 = vsel %vm95, %v1167, 0.0
    %1180 = vadd.xlane.f32.xlu0 %v1179
    %v1181 = vpop.xlane.xlu0 %1180
    %v1182 = vsel %vm95, %v1168, 0.0
    %1183 = vadd.xlane.f32.xlu0 %v1182
    %v1184 = vpop.xlane.xlu0 %1183
    %v1185 = vsel %vm95, %v1169, 0.0
    %1186 = vadd.xlane.f32.xlu0 %v1185
    %v1187 = vpop.xlane.xlu0 %1186
    %v1188 = vsel %vm95, %v1170, 0.0
    %1189 = vadd.xlane.f32.xlu0 %v1188
    %v1190 = vpop.xlane.xlu0 %1189
    %v1191 = vsel %vm95, %v1171, 0.0
    %1192 = vadd.xlane.f32.xlu0 %v1191
    %v1193 = vpop.xlane.xlu0 %1192
    %v1194 = vsel %vm95, %v1172, 0.0
    %1195 = vadd.xlane.f32.xlu0 %v1194
    %v1196 = vpop.xlane.xlu0 %1195
    %1197 = vxpose.xlu0.b32.start [1/16] %v1175, 128
    %1198 = vxpose.xlu0.b32.cont [2/16] %v1178, 128
    %1199 = vxpose.xlu0.b32.cont [3/16] %v1181, 128
    %1200 = vxpose.xlu0.b32.cont [4/16] %v1184, 128
    %1201 = vxpose.xlu0.b32.cont [5/16] %v1187, 128
    %1202 = vxpose.xlu0.b32.cont [6/16] %v1190, 128
    %1203 = vxpose.xlu0.b32.cont [7/16] %v1193, 128
    %1204 = vxpose.xlu0.b32.cont [8/16] %v1196, 128
    %1205 = vxpose.xlu0.b32.cont [9/16] 0.0, 128
    %1206 = vxpose.xlu0.b32.cont [10/16] 0.0, 128
    %1207 = vxpose.xlu0.b32.cont [11/16] 0.0, 128
    %1208 = vxpose.xlu0.b32.cont [12/16] 0.0, 128
    %1209 = vxpose.xlu0.b32.cont [13/16] 0.0, 128
    %1210 = vxpose.xlu0.b32.cont [14/16] 0.0, 128
    %1211 = vxpose.xlu0.b32.cont [15/16] 0.0, 128
    %1212 = vxpose.xlu0.b32.end [16/16] 0.0, 128
    %v1213 = vpop.trf.xlu0
    %v1214 = vpop.trf.xlu0
    %v1215 = vpop.trf.xlu0
    %v1216 = vpop.trf.xlu0
    %v1217 = vpop.trf.xlu0
    %v1218 = vpop.trf.xlu0
    %v1219 = vpop.trf.xlu0
    %v1220 = vpop.trf.xlu0
    %v1221 = vpop.trf.xlu0
    %v1222 = vpop.trf.xlu0
    %v1223 = vpop.trf.xlu0
    %v1224 = vpop.trf.xlu0
    %v1225 = vpop.trf.xlu0
    %v1226 = vpop.trf.xlu0
    %v1227 = vpop.trf.xlu0
    %v1228 = vpop.trf.xlu0
    %v1229 = vlaneseq
    %v1230 = vshrl.u32 %v1229, 7
    %v1231 = vsub.s32 0, %v1230
    %v1232 = vrot.slane %v1213, %v1231
    %v1233 = vadd.f32 %v1175, %v1232
    %v1234 = vadd.f32 %v1178, %v1232
    %v1235 = vadd.f32 %v1181, %v1232
    %v1236 = vadd.f32 %v1184, %v1232
    %v1237 = vadd.f32 %v1187, %v1232
    %v1238 = vadd.f32 %v1190, %v1232
    %v1239 = vadd.f32 %v1193, %v1232
    %v1240 = vadd.f32 %v1196, %v1232
    %s1241 = scalar_lea.vmem [#allocation4], 128
    %v1242 = vld [vmem:[%s1241] sm:$0xff]
    %v1243 = vld [vmem:[%s1241 + $0x8] sm:$0xff]
    %v1244 = vld [vmem:[%s1241 + $0x10] sm:$0xff]
    %v1245 = vld [vmem:[%s1241 + $0x18] sm:$0xff]
    %v1246 = vld [vmem:[%s1241 + $0x20] sm:$0xff]
    %v1247 = vld [vmem:[%s1241 + $0x28] sm:$0xff]
    %v1248 = vld [vmem:[%s1241 + $0x30] sm:$0xff]
    %v1249 = vld [vmem:[%s1241 + $0x38] sm:$0xff]
    %v1250 = vadd.f32 %v1233, %v1242
    %v1251 = vadd.f32 %v1234, %v1243
    %v1252 = vadd.f32 %v1235, %v1244
    %v1253 = vadd.f32 %v1236, %v1245
    %v1254 = vadd.f32 %v1237, %v1246
    %v1255 = vadd.f32 %v1238, %v1247
    %v1256 = vadd.f32 %v1239, %v1248
    %v1257 = vadd.f32 %v1240, %v1249
    %vm1258 = vcmp.ge.f32.partialorder %v1250, 0.0
    %vm1259 = vcmp.ge.f32.partialorder %v1251, 0.0
    %vm1260 = vcmp.ge.f32.partialorder %v1252, 0.0
    %vm1261 = vcmp.ge.f32.partialorder %v1253, 0.0
    %vm1262 = vcmp.ge.f32.partialorder %v1254, 0.0
    %vm1263 = vcmp.ge.f32.partialorder %v1255, 0.0
    %vm1264 = vcmp.ge.f32.partialorder %v1256, 0.0
    %vm1265 = vcmp.ge.f32.partialorder %v1257, 0.0
    %v1266 = vmul.f32 %v1250, 0.02
    %v1267 = vmul.f32 %v1251, 0.02
    %v1268 = vmul.f32 %v1252, 0.02
    %v1269 = vmul.f32 %v1253, 0.02
    %v1270 = vmul.f32 %v1254, 0.02
    %v1271 = vmul.f32 %v1255, 0.02
    %v1272 = vmul.f32 %v1256, 0.02
    %v1273 = vmul.f32 %v1257, 0.02
    %v1274 = vsel %vm1258, %v1250, %v1266
    %v1275 = vsel %vm1259, %v1251, %v1267
    %v1276 = vsel %vm1260, %v1252, %v1268
    %v1277 = vsel %vm1261, %v1253, %v1269
    %v1278 = vsel %vm1262, %v1254, %v1270
    %v1279 = vsel %vm1263, %v1255, %v1271
    %v1280 = vsel %vm1264, %v1256, %v1272
    %v1281 = vsel %vm1265, %v1257, %v1273
    %v1282 = vmul.f32 %v1274, %v60
    %v1283 = vmul.f32 %v1275, %v61
    %v1284 = vmul.f32 %v1276, %v62
    %v1285 = vmul.f32 %v1277, %v63
    %v1286 = vmul.f32 %v1278, %v64
    %v1287 = vmul.f32 %v1279, %v65
    %v1288 = vmul.f32 %v1280, %v66
    %v1289 = vmul.f32 %v1281, %v67
    %s1290 = scalar_lea.vmem %s6, 2
    %v1291 = vld [vmem:[%s1290] sm:$0x1]
    %v1293 = vlaneseq
    %v1294 = vshrl.u32 %v1293, 7
    %v1295 = vsub.s32 0, %v1294
    %v1296 = vrot.slane %v1291, %v1295
    %v1299 = vsel %vm363, %v1282, 0
    %v1302 = vsel %vm363, %v1283, 0
    %v1305 = vsel %vm363, %v1284, 0
    %v1308 = vsel %vm363, %v1285, 0
    %v1311 = vsel %vm363, %v1286, 0
    %v1314 = vsel %vm363, %v1287, 0
    %v1317 = vsel %vm363, %v1288, 0
    %v1320 = vsel %vm363, %v1289, 0
    %1322 = vmatprep.subr.mxu0 0.0
    %1323 = vmatpush1.msra.mxu0 %v1119
    %1324 = vmatprep.subr.mxu0 0.0
    %1325 = vmatpush1.msra.mxu0 %v1124
    %1326 = vmatprep.subr.mxu0 0.0
    %1327 = vmatpush1.msra.mxu0 %v1129
    %1328 = vmatprep.subr.mxu0 0.0
    %1329 = vmatpush1.msra.mxu0 %v1134
    %1330 = vmatprep.subr.mxu0 0.0
    %1331 = vmatpush1.msra.mxu0 %v1139
    %1332 = vmatprep.subr.mxu0 0.0
    %1333 = vmatpush1.msra.mxu0 %v1144
    %1334 = vmatprep.subr.mxu0 0.0
    %1335 = vmatpush1.msra.mxu0 %v1149
    %1336 = vmatprep.subr.mxu0 0.0
    %1337 = vmatpush1.msra.mxu0 %v1154
    %1338 = vmatprep.subr.mxu0 0.0
    %1339 = vmatpush1.msra.mxu0 0.0
    %1340 = vmatprep.subr.mxu0 0.0
    %1341 = vmatpush1.msra.mxu0 0.0
    %1342 = vmatprep.subr.mxu0 0.0
    %1343 = vmatpush1.msra.mxu0 0.0
    %1344 = vmatprep.subr.mxu0 0.0
    %1345 = vmatpush1.msra.mxu0 0.0
    %1346 = vmatprep.subr.mxu0 0.0
    %1347 = vmatpush1.msra.mxu0 0.0
    %1348 = vmatprep.subr.mxu0 0.0
    %1349 = vmatpush1.msra.mxu0 0.0
    %1350 = vmatprep.subr.mxu0 0.0
    %1351 = vmatpush1.msra.mxu0 0.0
    %1352 = vmatprep.subr.mxu0 0.0
    %1353 = vmatpush1.msra.mxu0 0.0
    %1354 = vmatprep.subr.mxu0 0.0
    %1355 = vmatpush1.msra.mxu0 0.0
    %1356 = vmatprep.subr.mxu0 0.0
    %1357 = vmatpush1.msra.mxu0 0.0
    %1358 = vmatprep.subr.mxu0 0.0
    %1359 = vmatpush1.msra.mxu0 0.0
    %1360 = vmatprep.subr.mxu0 0.0
    %1361 = vmatpush1.msra.mxu0 0.0
    %1362 = vmatprep.subr.mxu0 0.0
    %1363 = vmatpush1.msra.mxu0 0.0
    %1364 = vmatprep.subr.mxu0 0.0
    %1365 = vmatpush1.msra.mxu0 0.0
    %1366 = vmatprep.subr.mxu0 0.0
    %1367 = vmatpush1.msra.mxu0 0.0
    %1368 = vmatprep.subr.mxu0 0.0
    %1369 = vmatpush1.msra.mxu0 0.0
    %1370 = vmatprep.subr.mxu0 0.0
    %1371 = vmatpush1.msra.mxu0 0.0
    %1372 = vmatprep.subr.mxu0 0.0
    %1373 = vmatpush1.msra.mxu0 0.0
    %1374 = vmatprep.subr.mxu0 0.0
    %1375 = vmatpush1.msra.mxu0 0.0
    %1376 = vmatprep.subr.mxu0 0.0
    %1377 = vmatpush1.msra.mxu0 0.0
    %1378 = vmatprep.subr.mxu0 0.0
    %1379 = vmatpush1.msra.mxu0 0.0
    %1380 = vmatprep.subr.mxu0 0.0
    %1381 = vmatpush1.msra.mxu0 0.0
    %1382 = vmatprep.subr.mxu0 0.0
    %1383 = vmatpush1.msra.mxu0 0.0
    %1384 = vmatprep.subr.mxu0 0.0
    %1385 = vmatpush1.msra.mxu0 0.0
    %1386 = vmatprep.mubr.f32.mxu0 0.0
    %1387 = vmatmul.mubr.f32.gmra.mrb[0].mxu0 %v1299
    %v1388 = vpop.f32.mrb[0].mxu0
    %v1389 = vadd.f32 %v1296, %v1388
    %v1390 = vpop.f32.mrb[0].mxu0
    %1391 = vmatprep.mubr.f32.mxu0 0.0
    %1392 = vmatmul.mubr.f32.gmra.mrb[0].mxu0 %v1302
    %v1393 = vpop.f32.mrb[0].mxu0
    %v1394 = vadd.f32 %v1296, %v1393
    %v1395 = vpop.f32.mrb[0].mxu0
    %1396 = vmatprep.mubr.f32.mxu0 0.0
    %1397 = vmatmul.mubr.f32.gmra.mrb[0].mxu0 %v1305
    %v1398 = vpop.f32.mrb[0].mxu0
    %v1399 = vadd.f32 %v1296, %v1398
    %v1400 = vpop.f32.mrb[0].mxu0
    %1401 = vmatprep.mubr.f32.mxu0 0.0
    %1402 = vmatmul.mubr.f32.gmra.mrb[0].mxu0 %v1308
    %v1403 = vpop.f32.mrb[0].mxu0
    %v1404 = vadd.f32 %v1296, %v1403
    %v1405 = vpop.f32.mrb[0].mxu0
    %1406 = vmatprep.mubr.f32.mxu0 0.0
    %1407 = vmatmul.mubr.f32.gmra.mrb[0].mxu0 %v1311
    %v1408 = vpop.f32.mrb[0].mxu0
    %v1409 = vadd.f32 %v1296, %v1408
    %v1410 = vpop.f32.mrb[0].mxu0
    %1411 = vmatprep.mubr.f32.mxu0 0.0
    %1412 = vmatmul.mubr.f32.gmra.mrb[0].mxu0 %v1314
    %v1413 = vpop.f32.mrb[0].mxu0
    %v1414 = vadd.f32 %v1296, %v1413
    %v1415 = vpop.f32.mrb[0].mxu0
    %1416 = vmatprep.mubr.f32.mxu0 0.0
    %1417 = vmatmul.mubr.f32.gmra.mrb[0].mxu0 %v1317
    %v1418 = vpop.f32.mrb[0].mxu0
    %v1419 = vadd.f32 %v1296, %v1418
    %v1420 = vpop.f32.mrb[0].mxu0
    %1421 = vmatprep.mubr.f32.mxu0 0.0
    %1422 = vmatmul.mubr.f32.gmra.mrb[0].mxu0 %v1320
    %v1423 = vpop.f32.mrb[0].mxu0
    %v1424 = vadd.f32 %v1296, %v1423
    %v1425 = vpop.f32.mrb[0].mxu0
    %1426 = vdwg.mxu0
    %s1427 = scalar_lea.vmem %s7, 2
    %v1428 = vld [vmem:[%s1427] sm:$0x1]
    %v1430 = vlaneseq
    %v1431 = vshrl.u32 %v1430, 7
    %v1432 = vsub.s32 0, %v1431
    %v1433 = vrot.slane %v1428, %v1432
    %v1435 = vmul.f32 %v1389, %v1433
    %v1436 = vmul.f32 %v1394, %v1433
    %v1437 = vmul.f32 %v1399, %v1433
    %v1438 = vmul.f32 %v1404, %v1433
    %v1439 = vmul.f32 %v1409, %v1433
    %v1440 = vmul.f32 %v1414, %v1433
    %v1441 = vmul.f32 %v1419, %v1433
    %v1442 = vmul.f32 %v1424, %v1433
    %s1443 = scalar_lea.vmem %s8, 2
    %v1444 = vld [vmem:[%s1443] sm:$0x1]
    %v1446 = vlaneseq
    %v1447 = vshrl.u32 %v1446, 7
    %v1448 = vsub.s32 0, %v1447
    %v1449 = vrot.slane %v1444, %v1448
    %v1451 = vadd.f32 %v1435, %v1449
    %v1452 = vadd.f32 %v1436, %v1449
    %v1453 = vadd.f32 %v1437, %v1449
    %v1454 = vadd.f32 %v1438, %v1449
    %v1455 = vadd.f32 %v1439, %v1449
    %v1456 = vadd.f32 %v1440, %v1449
    %v1457 = vadd.f32 %v1441, %v1449
    %v1458 = vadd.f32 %v1442, %v1449
    %v1459 = vmax.f32 %v1451, 0.0
    %v1460 = vmax.f32 %v1452, 0.0
    %v1461 = vmax.f32 %v1453, 0.0
    %v1462 = vmax.f32 %v1454, 0.0
    %v1463 = vmax.f32 %v1455, 0.0
    %v1464 = vmax.f32 %v1456, 0.0
    %v1465 = vmax.f32 %v1457, 0.0
    %v1466 = vmax.f32 %v1458, 0.0
    %v1467 = vadd.f32 %v1459, %v999
    %v1468 = vadd.f32 %v1460, %v1000
    %v1469 = vadd.f32 %v1461, %v1001
    %v1470 = vadd.f32 %v1462, %v1002
    %v1471 = vadd.f32 %v1463, %v1003
    %v1472 = vadd.f32 %v1464, %v1004
    %v1473 = vadd.f32 %v1465, %v1005
    %v1474 = vadd.f32 %v1466, %v1006
    %1475 = vst.msk [vmem:[%s9] sm:$0xff] %vm95, %v1467
    %1476 = vst.msk [vmem:[%s9 + $0x8] sm:$0xff] %vm95, %v1468
    %1477 = vst.msk [vmem:[%s9 + $0x10] sm:$0xff] %vm95, %v1469
    %1478 = vst.msk [vmem:[%s9 + $0x18] sm:$0xff] %vm95, %v1470
    %1479 = vst.msk [vmem:[%s9 + $0x20] sm:$0xff] %vm95, %v1471
    %1480 = vst.msk [vmem:[%s9 + $0x28] sm:$0xff] %vm95, %v1472
    %1481 = vst.msk [vmem:[%s9 + $0x30] sm:$0xff] %vm95, %v1473
    %1482 = vst.msk [vmem:[%s9 + $0x38] sm:$0xff] %vm95, %v1474
    // Predicated region
    $region46: #{tpu_custom_call.1} parent=1 // pred_check
      _
    $region47: #{tpu_custom_call.1} parent=1 // pred_check_branch
      %1484 = sbr.rel (0) target = $region49
    $region48: #{tpu_custom_call.1} parent=1 // pred_region
      _
    $region49: #{tpu_custom_call.1} parent=1 // pred_fallthru
      _
    // Predicated region
    $region50: #{tpu_custom_call.1} parent=1 // pred_check
      _
    $region51: #{tpu_custom_call.1} parent=1 // pred_check_branch
      %1486 = sbr.rel (0) target = $region53
    $region52: #{tpu_custom_call.1} parent=1 // pred_region
      _
    $region53: #{tpu_custom_call.1} parent=1 // pred_fallthru
      _
    %1487 = vsyncpa [#allocation3], 1
    %1488 = vsyncpa [#allocation5], 1

</llo_original>
